<compile_context>
chip_gen: v6e
topology: v6e:2x2x1
jax: 0.10.0
libtpu: 0.0.40
codegen_flags: <defaults>
</compile_context>

<pallas_src>
import jax
import jax.numpy as jnp
from jax.experimental import pallas as pl
from jax.experimental.pallas import tpu as pltpu


def sentiment_lstm_kernel(
    xflat_ref,     # (TT*Bp, E)  bf16, time-major time-tile of embeddings
    h_init_ref,    # (2, Bp, H)  f32
    c_init_ref,    # (2, Bp, H)  f32
    wih0_ref,      # (E, 4H)     bf16  W_ih0^T
    wtop_ref,      # (H, 8H)     bf16  [W_hh0^T | W_ih1^T]
    whh1t_ref,     # (H, 4H)     bf16  W_hh1^T
    b0_ref,        # (1, 4H)     f32   b_ih0 + b_hh0
    b1_ref,        # (1, 4H)     f32   b_ih1 + b_hh1
    wfc_ref,       # (1, H)      f32
    bfc_ref,       # (1, 1)      f32
    out_ref,       # (Bp, 1)     f32
    hn_ref,        # (2, Bp, H)  f32
    cn_ref,        # (2, Bp, H)  f32
    h0_s, c0_s, h1_s, c1_s,   # (Bp, H)  f32 scratch, persists across time tiles
    g0rec_s,                  # (Bp, 4H) f32 scratch: h0_{t-1} @ W_hh0^T carry
):
    Bp = h_init_ref.shape[1]
    H = h_init_ref.shape[2]
    TT = xflat_ref.shape[0] // Bp          # timesteps in this tile (static)
    cdt = wih0_ref.dtype                    # bf16 compute dtype for MXU LHS casts

    ti = pl.program_id(0)

    @pl.when(ti == 0)
    def _init():
        h0_s[...] = h_init_ref[0]
        c0_s[...] = c_init_ref[0]
        h1_s[...] = h_init_ref[1]
        c1_s[...] = c_init_ref[1]
        # recurrent half of layer-0's very first gate: h0_init @ W_hh0^T
        g0rec_s[...] = jnp.dot(
            h_init_ref[0].astype(cdt), wtop_ref[:, : 4 * H],
            preferred_element_type=jnp.float32)

    # ---- hoisted per-tile work (off the serial critical path) ---------------
    # Layer-0 input projection for the whole time tile at once, bias folded in.
    xproj = (
        jnp.dot(xflat_ref[...], wih0_ref[...], preferred_element_type=jnp.float32)
        + b0_ref[...]
    )                                                        # (TT*Bp, 4H) f32
    b1_b = jnp.broadcast_to(b1_ref[...], (Bp, 4 * H))        # hoisted broadcast
    wtop = wtop_ref[...]
    whh1t = whh1t_ref[...]

    def nonlin(gates, c_prev):
        # One full-vreg sigmoid over all 4H lanes (g lanes wasted, harmless),
        # tanh only on g.  All f32 (no bf16 VPU/EUP on v5e).
        s = jax.nn.sigmoid(gates)
        i = s[:, 0 * H:1 * H]
        f = s[:, 1 * H:2 * H]
        o = s[:, 3 * H:4 * H]
        g = jnp.tanh(gates[:, 2 * H:3 * H])
        c = f * c_prev + i * g
        h = o * jnp.tanh(c)
        return h, c

    # ---- recurrent state in vregs within the tile ---------------------------
    h0 = h0_s[...]
    c0 = c0_s[...]
    h1 = h1_s[...]
    c1 = c1_s[...]
    g0rec = g0rec_s[...]

    # TODO(synk): inter-layer LSTM dropout is training-only; eval = identity.
    for t in range(TT):  # static unroll, bounded (<= 32 steps per tile)
        # layer-1 recurrent half: depends only on h1_{t-1} -> overlappable dot
        g1_rec = jnp.dot(h1.astype(cdt), whh1t, preferred_element_type=jnp.float32)
        # layer-0 gate for step t (aligned (Bp,4H) slab: Bp is a sublane multiple)
        g0 = xproj[t * Bp:(t + 1) * Bp, :] + g0rec
        h0, c0 = nonlin(g0, c0)
        # fused critical-path dot: [g0_rec for step t+1 | layer-1 input half]
        big = jnp.dot(h0.astype(cdt), wtop, preferred_element_type=jnp.float32)
        g0rec = big[:, : 4 * H]
        g1 = big[:, 4 * H:] + g1_rec + b1_b
        h1, c1 = nonlin(g1, c1)

    # carry state to the next time tile
    h0_s[...] = h0
    c0_s[...] = c0
    h1_s[...] = h1
    c1_s[...] = c1
    g0rec_s[...] = g0rec

    @pl.when(ti == pl.num_programs(0) - 1)
    def _finalize():
        # lstm_out[:, -1, :] == h1 (top layer); Dropout is identity in eval.
        # FC(H -> 1) as VPU multiply + lane reduction (no N=1 MXU pass).
        logits = jnp.sum(h1 * wfc_ref[...], axis=-1, keepdims=True) + bfc_ref[...]
        out_ref[...] = jax.nn.sigmoid(logits)
        hn_ref[0] = h0
        hn_ref[1] = h1
        cn_ref[0] = c0
        cn_ref[1] = c1


@jax.jit
def sentiment_forward(x_tokens, hidden, params):
    """x_tokens: (B, T) int32 token ids; hidden: (h0, c0) each (2, B, H)."""
    h0, c0 = hidden
    B, T = x_tokens.shape
    H = h0.shape[-1]
    E = params["embedding"].shape[1]

    if params["w_fc"].shape[0] != 1:
        raise NotImplementedError("FC lane-reduction path assumes output_dim == 1")

    # pad batch to a sublane multiple so per-step slices are tile-aligned views
    B_pad = ((B + 7) // 8) * 8

    # glue: time-major embedding gather (transpose the cheap int32 token matrix,
    # not the float embeddings), pad batch, flatten, cast MXU operand to bf16.
    emb = jnp.take(params["embedding"], x_tokens.T, axis=0)         # (T, B, E)
    emb = jnp.pad(emb, ((0, 0), (0, B_pad - B), (0, 0)))            # (T, Bp, E)
    xflat = emb.reshape(T * B_pad, E).astype(jnp.bfloat16)

    h0_p = jnp.pad(h0, ((0, 0), (0, B_pad - B), (0, 0)))
    c0_p = jnp.pad(c0, ((0, 0), (0, B_pad - B), (0, 0)))

    # glue: weight prep — transpose to (in, out), fuse biases, build the skewed
    # fused RHS [W_hh0^T | W_ih1^T]; bf16 MXU operands, f32 accumulation in-kernel.
    wih0_t = params["w_ih0"].T.astype(jnp.bfloat16)                 # (E, 4H)
    wtop = jnp.concatenate(
        [params["w_hh0"].T, params["w_ih1"].T], axis=1).astype(jnp.bfloat16)  # (H, 8H)
    whh1_t = params["w_hh1"].T.astype(jnp.bfloat16)                 # (H, 4H)
    b0 = (params["b_ih0"] + params["b_hh0"]).reshape(1, 4 * H)
    b1 = (params["b_ih1"] + params["b_hh1"]).reshape(1, 4 * H)
    wfc_row = params["w_fc"].reshape(1, H)
    bfc = params["b_fc"].reshape(1, 1)

    # time-tile size: single tile at demo sizes, bounded VMEM at production T
    tt = next((c for c in (32, 16, 8, 4, 2, 1) if T % c == 0), 1)
    n_tiles = T // tt

    vmem = pl.BlockSpec(memory_space=pltpu.MemorySpace.VMEM)

    # TODO(synk): for large B on v7x, add a leading batch grid axis marked
    # 'parallel' (shard the recurrence across the two TensorCores) and raise
    # vmem_limit_bytes if the chosen time tile needs it.
    out_p, hn_p, cn_p = pl.pallas_call(
        sentiment_lstm_kernel,
        grid=(n_tiles,),
        out_shape=(
            jax.ShapeDtypeStruct((B_pad, 1), jnp.float32),           # sigmoid(fc(.))
            jax.ShapeDtypeStruct((2, B_pad, H), jnp.float32),        # h_n
            jax.ShapeDtypeStruct((2, B_pad, H), jnp.float32),        # c_n
        ),
        in_specs=[
            pl.BlockSpec((tt * B_pad, E), lambda i: (i, 0)),         # time-tiled emb
            vmem, vmem,                                              # h_init, c_init
            vmem, vmem, vmem,                                        # wih0, wtop, whh1t
            vmem, vmem, vmem, vmem,                                  # b0, b1, wfc, bfc
        ],
        out_specs=(vmem, vmem, vmem),
        scratch_shapes=[
            pltpu.VMEM((B_pad, H), jnp.float32),       # h0
            pltpu.VMEM((B_pad, H), jnp.float32),       # c0
            pltpu.VMEM((B_pad, H), jnp.float32),       # h1
            pltpu.VMEM((B_pad, H), jnp.float32),       # c1
            pltpu.VMEM((B_pad, 4 * H), jnp.float32),   # g0rec carry
        ],
        input_output_aliases={1: 1, 2: 2},             # h_init -> h_n, c_init -> c_n
        compiler_params=pltpu.CompilerParams(
            dimension_semantics=("arbitrary",)),
    )(xflat, h0_p, c0_p, wih0_t, wtop, whh1_t, b0, b1, wfc_row, bfc)

    return out_p[:B], (hn_p[:, :B], cn_p[:, :B])


def init_params(key, vocab_size, embedding_dim, hidden_dim, output_dim):
    """Deterministic parameter init mirroring PyTorch default shapes."""
    E, H = embedding_dim, hidden_dim
    ks = jax.random.split(key, 12)
    s = 1.0 / jnp.sqrt(jnp.float32(H))  # PyTorch LSTM/Linear uniform bound
    u = lambda k, shp: jax.random.uniform(k, shp, jnp.float32, -s, s)
    return {
        "embedding": jax.random.normal(ks[0], (vocab_size, E), jnp.float32),
        # LSTM layer 0
        "w_ih0": u(ks[1], (4 * H, E)),
        "w_hh0": u(ks[2], (4 * H, H)),
        "b_ih0": u(ks[3], (4 * H,)),
        "b_hh0": u(ks[4], (4 * H,)),
        # LSTM layer 1
        "w_ih1": u(ks[5], (4 * H, H)),
        "w_hh1": u(ks[6], (4 * H, H)),
        "b_ih1": u(ks[7], (4 * H,)),
        "b_hh1": u(ks[8], (4 * H,)),
        # fc
        "w_fc": u(ks[9], (output_dim, H)),
        "b_fc": u(ks[10], (output_dim,)),
    }


if __name__ == "__main__":
    # small shapes consistent with the module's forward
    B, T = 2, 8
    vocab_size, embedding_dim, hidden_dim, n_layers, output_dim = 50, 32, 32, 2, 1

    key = jax.random.PRNGKey(0)
    k_params, k_x = jax.random.split(key)

    params = init_params(k_params, vocab_size, embedding_dim, hidden_dim, output_dim)
    x = jax.random.randint(k_x, (B, T), 0, vocab_size, dtype=jnp.int32)

    # init_hidden(batch_size): zeros of shape (n_layers, B, H)
    h0 = jnp.zeros((n_layers, B, hidden_dim), jnp.float32)
    c0 = jnp.zeros((n_layers, B, hidden_dim), jnp.float32)

    out, (hn, cn) = sentiment_forward(x, (h0, c0), params)
    jax.block_until_ready((out, hn, cn))

    assert out.shape == (B, 1)
    assert hn.shape == (n_layers, B, hidden_dim)
    assert cn.shape == (n_layers, B, hidden_dim)
    print("KERNEL_OK")
</pallas_src>

<mosaic_0001>
module attributes {stable_mosaic.version = 11 : i64} {
  func.func @sentiment_lstm_kernel(%arg0: i32, %arg1: memref<64x32xbf16, #tpu.memory_space<vmem>>, %arg2: memref<2x8x32xf32, #tpu.memory_space<vmem>>, %arg3: memref<2x8x32xf32, #tpu.memory_space<vmem>>, %arg4: memref<32x128xbf16, #tpu.memory_space<vmem>>, %arg5: memref<32x256xbf16, #tpu.memory_space<vmem>>, %arg6: memref<32x128xbf16, #tpu.memory_space<vmem>>, %arg7: memref<1x128xf32, #tpu.memory_space<vmem>>, %arg8: memref<1x128xf32, #tpu.memory_space<vmem>>, %arg9: memref<1x32xf32, #tpu.memory_space<vmem>>, %arg10: memref<1x1xf32, #tpu.memory_space<vmem>>, %arg11: memref<8x1xf32, #tpu.memory_space<vmem>>, %arg12: memref<2x8x32xf32, #tpu.memory_space<vmem>>, %arg13: memref<2x8x32xf32, #tpu.memory_space<vmem>>, %arg14: memref<8x32xf32, #tpu.memory_space<vmem>>, %arg15: memref<8x32xf32, #tpu.memory_space<vmem>>, %arg16: memref<8x32xf32, #tpu.memory_space<vmem>>, %arg17: memref<8x32xf32, #tpu.memory_space<vmem>>, %arg18: memref<8x128xf32, #tpu.memory_space<vmem>>) attributes {dimension_semantics = [#tpu.dimension_semantics<arbitrary>], iteration_bounds = array<i64: 1>, scalar_prefetch = 0 : i64, scratch_operands = 5 : i64, tpu.core_type = #tpu.core_type<tc>, window_params = [{transform_indices = @transform_0, window_bounds = array<i64: 64, 32>}, {pipeline_mode = #tpu.pipeline_mode<synchronous>, transform_indices = @transform_1, window_bounds = array<i64: 2, 8, 32>}, {pipeline_mode = #tpu.pipeline_mode<synchronous>, transform_indices = @transform_2, window_bounds = array<i64: 2, 8, 32>}, {pipeline_mode = #tpu.pipeline_mode<synchronous>, transform_indices = @transform_3, window_bounds = array<i64: 32, 128>}, {pipeline_mode = #tpu.pipeline_mode<synchronous>, transform_indices = @transform_4, window_bounds = array<i64: 32, 256>}, {pipeline_mode = #tpu.pipeline_mode<synchronous>, transform_indices = @transform_5, window_bounds = array<i64: 32, 128>}, {pipeline_mode = #tpu.pipeline_mode<synchronous>, transform_indices = @transform_6, window_bounds = array<i64: 1, 128>}, {pipeline_mode = #tpu.pipeline_mode<synchronous>, transform_indices = @transform_7, window_bounds = array<i64: 1, 128>}, {pipeline_mode = #tpu.pipeline_mode<synchronous>, transform_indices = @transform_8, window_bounds = array<i64: 1, 32>}, {pipeline_mode = #tpu.pipeline_mode<synchronous>, transform_indices = @transform_9, window_bounds = array<i64: 1, 1>}, {pipeline_mode = #tpu.pipeline_mode<synchronous>, transform_indices = @transform_10, window_bounds = array<i64: 8, 1>}, {pipeline_mode = #tpu.pipeline_mode<synchronous>, transform_indices = @transform_11, window_bounds = array<i64: 2, 8, 32>}, {pipeline_mode = #tpu.pipeline_mode<synchronous>, transform_indices = @transform_12, window_bounds = array<i64: 2, 8, 32>}]} {
    %c0_i32 = arith.constant 0 : i32
    %0 = arith.cmpi eq, %arg0, %c0_i32 : i32
    %1 = arith.extui %0 : i1 to i32
    %c0_i32_0 = arith.constant 0 : i32
    %2 = arith.cmpi ne, %1, %c0_i32_0 : i32
    scf.if %2 {
      %c0_64 = arith.constant 0 : index
      %c0_65 = arith.constant 0 : index
      %c0_66 = arith.constant 0 : index
      %346 = vector.load %arg2[%c0_64, %c0_65, %c0_66] : memref<2x8x32xf32, #tpu.memory_space<vmem>>, vector<1x8x32xf32>
      %347 = vector.shape_cast %346 : vector<1x8x32xf32> to vector<8x32xf32>
      %c0_67 = arith.constant 0 : index
      %c0_68 = arith.constant 0 : index
      %348 = vector.load %arg14[%c0_67, %c0_68] : memref<8x32xf32, #tpu.memory_space<vmem>>, vector<8x32xf32>
      tpu.vector_store %arg14[%c0_67, %c0_68], %347 {strides = array<i32>} : memref<8x32xf32, #tpu.memory_space<vmem>>, vector<8x32xf32>,
      %c0_69 = arith.constant 0 : index
      %c0_70 = arith.constant 0 : index
      %c0_71 = arith.constant 0 : index
      %349 = vector.load %arg3[%c0_69, %c0_70, %c0_71] : memref<2x8x32xf32, #tpu.memory_space<vmem>>, vector<1x8x32xf32>
      %350 = vector.shape_cast %349 : vector<1x8x32xf32> to vector<8x32xf32>
      %c0_72 = arith.constant 0 : index
      %c0_73 = arith.constant 0 : index
      %351 = vector.load %arg15[%c0_72, %c0_73] : memref<8x32xf32, #tpu.memory_space<vmem>>, vector<8x32xf32>
      tpu.vector_store %arg15[%c0_72, %c0_73], %350 {strides = array<i32>} : memref<8x32xf32, #tpu.memory_space<vmem>>, vector<8x32xf32>,
      %c1 = arith.constant 1 : index
      %c0_74 = arith.constant 0 : index
      %c0_75 = arith.constant 0 : index
      %352 = vector.load %arg2[%c1, %c0_74, %c0_75] : memref<2x8x32xf32, #tpu.memory_space<vmem>>, vector<1x8x32xf32>
      %353 = vector.shape_cast %352 : vector<1x8x32xf32> to vector<8x32xf32>
      %c0_76 = arith.constant 0 : index
      %c0_77 = arith.constant 0 : index
      %354 = vector.load %arg16[%c0_76, %c0_77] : memref<8x32xf32, #tpu.memory_space<vmem>>, vector<8x32xf32>
      tpu.vector_store %arg16[%c0_76, %c0_77], %353 {strides = array<i32>} : memref<8x32xf32, #tpu.memory_space<vmem>>, vector<8x32xf32>,
      %c1_78 = arith.constant 1 : index
      %c0_79 = arith.constant 0 : index
      %c0_80 = arith.constant 0 : index
      %355 = vector.load %arg3[%c1_78, %c0_79, %c0_80] : memref<2x8x32xf32, #tpu.memory_space<vmem>>, vector<1x8x32xf32>
      %356 = vector.shape_cast %355 : vector<1x8x32xf32> to vector<8x32xf32>
      %c0_81 = arith.constant 0 : index
      %c0_82 = arith.constant 0 : index
      %357 = vector.load %arg17[%c0_81, %c0_82] : memref<8x32xf32, #tpu.memory_space<vmem>>, vector<8x32xf32>
      tpu.vector_store %arg17[%c0_81, %c0_82], %356 {strides = array<i32>} : memref<8x32xf32, #tpu.memory_space<vmem>>, vector<8x32xf32>,
      %c0_83 = arith.constant 0 : index
      %c0_84 = arith.constant 0 : index
      %c0_85 = arith.constant 0 : index
      %358 = vector.load %arg2[%c0_83, %c0_84, %c0_85] : memref<2x8x32xf32, #tpu.memory_space<vmem>>, vector<1x8x32xf32>
      %359 = vector.shape_cast %358 : vector<1x8x32xf32> to vector<8x32xf32>
      %360 = arith.truncf %359 : vector<8x32xf32> to vector<8x32xbf16>
      %c0_86 = arith.constant 0 : index
      %c0_87 = arith.constant 0 : index
      %361 = vector.load %arg5[%c0_86, %c0_87] : memref<32x256xbf16, #tpu.memory_space<vmem>>, vector<32x128xbf16>
      %cst_88 = arith.constant dense<0.000000e+00> : vector<8x128xf32>
      %362 = tpu.matmul %360, %361, %cst_88 {dimension_numbers = #tpu.dot_dimension_numbers<[1], [0], [0], [1], [0, 0, 1, 1], [], []>} : vector<8x32xbf16>, vector<32x128xbf16>, vector<8x128xf32> -> vector<8x128xf32>
      %c0_89 = arith.constant 0 : index
      %c0_90 = arith.constant 0 : index
      %363 = vector.load %arg18[%c0_89, %c0_90] : memref<8x128xf32, #tpu.memory_space<vmem>>, vector<8x128xf32>
      tpu.vector_store %arg18[%c0_89, %c0_90], %362 {strides = array<i32>} : memref<8x128xf32, #tpu.memory_space<vmem>>, vector<8x128xf32>,
    } else {
    }
    %c0 = arith.constant 0 : index
    %c0_1 = arith.constant 0 : index
    %3 = vector.load %arg1[%c0, %c0_1] : memref<64x32xbf16, #tpu.memory_space<vmem>>, vector<64x32xbf16>
    %c0_2 = arith.constant 0 : index
    %c0_3 = arith.constant 0 : index
    %4 = vector.load %arg4[%c0_2, %c0_3] : memref<32x128xbf16, #tpu.memory_space<vmem>>, vector<32x128xbf16>
    %cst = arith.constant dense<0.000000e+00> : vector<64x128xf32>
    %5 = tpu.matmul %3, %4, %cst {dimension_numbers = #tpu.dot_dimension_numbers<[1], [0], [0], [1], [0, 0, 1, 1], [], []>} : vector<64x32xbf16>, vector<32x128xbf16>, vector<64x128xf32> -> vector<64x128xf32>
    %c0_4 = arith.constant 0 : index
    %c0_5 = arith.constant 0 : index
    %6 = vector.load %arg7[%c0_4, %c0_5] : memref<1x128xf32, #tpu.memory_space<vmem>>, vector<1x128xf32>
    %7 = vector.broadcast %6 : vector<1x128xf32> to vector<64x128xf32>
    %8 = arith.addf %5, %7 : vector<64x128xf32>
    %c0_6 = arith.constant 0 : index
    %c0_7 = arith.constant 0 : index
    %9 = vector.load %arg8[%c0_6, %c0_7] : memref<1x128xf32, #tpu.memory_space<vmem>>, vector<1x128xf32>
    %10 = vector.shape_cast %9 : vector<1x128xf32> to vector<1x128xf32>
    %11 = vector.broadcast %10 : vector<1x128xf32> to vector<8x128xf32>
    %c0_8 = arith.constant 0 : index
    %c0_9 = arith.constant 0 : index
    %12 = vector.load %arg5[%c0_8, %c0_9] : memref<32x256xbf16, #tpu.memory_space<vmem>>, vector<32x256xbf16>
    %c0_10 = arith.constant 0 : index
    %c0_11 = arith.constant 0 : index
    %13 = vector.load %arg6[%c0_10, %c0_11] : memref<32x128xbf16, #tpu.memory_space<vmem>>, vector<32x128xbf16>
    %c0_12 = arith.constant 0 : index
    %c0_13 = arith.constant 0 : index
    %14 = vector.load %arg15[%c0_12, %c0_13] : memref<8x32xf32, #tpu.memory_space<vmem>>, vector<8x32xf32>
    %c0_14 = arith.constant 0 : index
    %c0_15 = arith.constant 0 : index
    %15 = vector.load %arg16[%c0_14, %c0_15] : memref<8x32xf32, #tpu.memory_space<vmem>>, vector<8x32xf32>
    %c0_16 = arith.constant 0 : index
    %c0_17 = arith.constant 0 : index
    %16 = vector.load %arg17[%c0_16, %c0_17] : memref<8x32xf32, #tpu.memory_space<vmem>>, vector<8x32xf32>
    %c0_18 = arith.constant 0 : index
    %c0_19 = arith.constant 0 : index
    %17 = vector.load %arg18[%c0_18, %c0_19] : memref<8x128xf32, #tpu.memory_space<vmem>>, vector<8x128xf32>
    %18 = arith.truncf %15 : vector<8x32xf32> to vector<8x32xbf16>
    %cst_20 = arith.constant dense<0.000000e+00> : vector<8x128xf32>
    %19 = tpu.matmul %18, %13, %cst_20 {dimension_numbers = #tpu.dot_dimension_numbers<[1], [0], [0], [1], [0, 0, 1, 1], [], []>} : vector<8x32xbf16>, vector<32x128xbf16>, vector<8x128xf32> -> vector<8x128xf32>
    %20 = vector.extract_strided_slice %8 {offsets = [0, 0], sizes = [8, 128], strides = [1, 1]} : vector<64x128xf32> to vector<8x128xf32>
    %21 = arith.addf %20, %17 : vector<8x128xf32>
    %22 = arith.negf %21 : vector<8x128xf32>
    %23 = math.exp %22 : vector<8x128xf32>
    %cst_21 = arith.constant 1.000000e+00 : f32
    %24 = vector.broadcast %cst_21 : f32 to vector<8x128xf32>
    %25 = arith.addf %24, %23 : vector<8x128xf32>
    %26 = arith.divf %24, %25 : vector<8x128xf32>
    %27 = vector.extract_strided_slice %26 {offsets = [0, 0], sizes = [8, 32], strides = [1, 1]} : vector<8x128xf32> to vector<8x32xf32>
    %28 = vector.extract_strided_slice %26 {offsets = [0, 32], sizes = [8, 32], strides = [1, 1]} : vector<8x128xf32> to vector<8x32xf32>
    %29 = vector.extract_strided_slice %26 {offsets = [0, 96], sizes = [8, 32], strides = [1, 1]} : vector<8x128xf32> to vector<8x32xf32>
    %30 = vector.extract_strided_slice %21 {offsets = [0, 64], sizes = [8, 32], strides = [1, 1]} : vector<8x128xf32> to vector<8x32xf32>
    %31 = math.tanh %30 : vector<8x32xf32>
    %32 = arith.mulf %28, %14 : vector<8x32xf32>
    %33 = arith.mulf %27, %31 : vector<8x32xf32>
    %34 = arith.addf %32, %33 : vector<8x32xf32>
    %35 = math.tanh %34 : vector<8x32xf32>
    %36 = arith.mulf %29, %35 : vector<8x32xf32>
    %37 = arith.truncf %36 : vector<8x32xf32> to vector<8x32xbf16>
    %cst_22 = arith.constant dense<0.000000e+00> : vector<8x256xf32>
    %38 = tpu.matmul %37, %12, %cst_22 {dimension_numbers = #tpu.dot_dimension_numbers<[1], [0], [0], [1], [0, 0, 1, 1], [], []>} : vector<8x32xbf16>, vector<32x256xbf16>, vector<8x256xf32> -> vector<8x256xf32>
    %39 = vector.extract_strided_slice %38 {offsets = [0, 0], sizes = [8, 128], strides = [1, 1]} : vector<8x256xf32> to vector<8x128xf32>
    %40 = vector.extract_strided_slice %38 {offsets = [0, 128], sizes = [8, 128], strides = [1, 1]} : vector<8x256xf32> to vector<8x128xf32>
    %41 = arith.addf %40, %19 : vector<8x128xf32>
    %42 = arith.addf %41, %11 : vector<8x128xf32>
    %43 = arith.negf %42 : vector<8x128xf32>
    %44 = math.exp %43 : vector<8x128xf32>
    %cst_23 = arith.constant 1.000000e+00 : f32
    %45 = vector.broadcast %cst_23 : f32 to vector<8x128xf32>
    %46 = arith.addf %45, %44 : vector<8x128xf32>
    %47 = arith.divf %45, %46 : vector<8x128xf32>
    %48 = vector.extract_strided_slice %47 {offsets = [0, 0], sizes = [8, 32], strides = [1, 1]} : vector<8x128xf32> to vector<8x32xf32>
    %49 = vector.extract_strided_slice %47 {offsets = [0, 32], sizes = [8, 32], strides = [1, 1]} : vector<8x128xf32> to vector<8x32xf32>
    %50 = vector.extract_strided_slice %47 {offsets = [0, 96], sizes = [8, 32], strides = [1, 1]} : vector<8x128xf32> to vector<8x32xf32>
    %51 = vector.extract_strided_slice %42 {offsets = [0, 64], sizes = [8, 32], strides = [1, 1]} : vector<8x128xf32> to vector<8x32xf32>
    %52 = math.tanh %51 : vector<8x32xf32>
    %53 = arith.mulf %49, %16 : vector<8x32xf32>
    %54 = arith.mulf %48, %52 : vector<8x32xf32>
    %55 = arith.addf %53, %54 : vector<8x32xf32>
    %56 = math.tanh %55 : vector<8x32xf32>
    %57 = arith.mulf %50, %56 : vector<8x32xf32>
    %58 = arith.truncf %57 : vector<8x32xf32> to vector<8x32xbf16>
    %cst_24 = arith.constant dense<0.000000e+00> : vector<8x128xf32>
    %59 = tpu.matmul %58, %13, %cst_24 {dimension_numbers = #tpu.dot_dimension_numbers<[1], [0], [0], [1], [0, 0, 1, 1], [], []>} : vector<8x32xbf16>, vector<32x128xbf16>, vector<8x128xf32> -> vector<8x128xf32>
    %60 = vector.extract_strided_slice %8 {offsets = [8, 0], sizes = [8, 128], strides = [1, 1]} : vector<64x128xf32> to vector<8x128xf32>
    %61 = arith.addf %60, %39 : vector<8x128xf32>
    %62 = arith.negf %61 : vector<8x128xf32>
    %63 = math.exp %62 : vector<8x128xf32>
    %cst_25 = arith.constant 1.000000e+00 : f32
    %64 = vector.broadcast %cst_25 : f32 to vector<8x128xf32>
    %65 = arith.addf %64, %63 : vector<8x128xf32>
    %66 = arith.divf %64, %65 : vector<8x128xf32>
    %67 = vector.extract_strided_slice %66 {offsets = [0, 0], sizes = [8, 32], strides = [1, 1]} : vector<8x128xf32> to vector<8x32xf32>
    %68 = vector.extract_strided_slice %66 {offsets = [0, 32], sizes = [8, 32], strides = [1, 1]} : vector<8x128xf32> to vector<8x32xf32>
    %69 = vector.extract_strided_slice %66 {offsets = [0, 96], sizes = [8, 32], strides = [1, 1]} : vector<8x128xf32> to vector<8x32xf32>
    %70 = vector.extract_strided_slice %61 {offsets = [0, 64], sizes = [8, 32], strides = [1, 1]} : vector<8x128xf32> to vector<8x32xf32>
    %71 = math.tanh %70 : vector<8x32xf32>
    %72 = arith.mulf %68, %34 : vector<8x32xf32>
    %73 = arith.mulf %67, %71 : vector<8x32xf32>
    %74 = arith.addf %72, %73 : vector<8x32xf32>
    %75 = math.tanh %74 : vector<8x32xf32>
    %76 = arith.mulf %69, %75 : vector<8x32xf32>
    %77 = arith.truncf %76 : vector<8x32xf32> to vector<8x32xbf16>
    %cst_26 = arith.constant dense<0.000000e+00> : vector<8x256xf32>
    %78 = tpu.matmul %77, %12, %cst_26 {dimension_numbers = #tpu.dot_dimension_numbers<[1], [0], [0], [1], [0, 0, 1, 1], [], []>} : vector<8x32xbf16>, vector<32x256xbf16>, vector<8x256xf32> -> vector<8x256xf32>
    %79 = vector.extract_strided_slice %78 {offsets = [0, 0], sizes = [8, 128], strides = [1, 1]} : vector<8x256xf32> to vector<8x128xf32>
    %80 = vector.extract_strided_slice %78 {offsets = [0, 128], sizes = [8, 128], strides = [1, 1]} : vector<8x256xf32> to vector<8x128xf32>
    %81 = arith.addf %80, %59 : vector<8x128xf32>
    %82 = arith.addf %81, %11 : vector<8x128xf32>
    %83 = arith.negf %82 : vector<8x128xf32>
    %84 = math.exp %83 : vector<8x128xf32>
    %cst_27 = arith.constant 1.000000e+00 : f32
    %85 = vector.broadcast %cst_27 : f32 to vector<8x128xf32>
    %86 = arith.addf %85, %84 : vector<8x128xf32>
    %87 = arith.divf %85, %86 : vector<8x128xf32>
    %88 = vector.extract_strided_slice %87 {offsets = [0, 0], sizes = [8, 32], strides = [1, 1]} : vector<8x128xf32> to vector<8x32xf32>
    %89 = vector.extract_strided_slice %87 {offsets = [0, 32], sizes = [8, 32], strides = [1, 1]} : vector<8x128xf32> to vector<8x32xf32>
    %90 = vector.extract_strided_slice %87 {offsets = [0, 96], sizes = [8, 32], strides = [1, 1]} : vector<8x128xf32> to vector<8x32xf32>
    %91 = vector.extract_strided_slice %82 {offsets = [0, 64], sizes = [8, 32], strides = [1, 1]} : vector<8x128xf32> to vector<8x32xf32>
    %92 = math.tanh %91 : vector<8x32xf32>
    %93 = arith.mulf %89, %55 : vector<8x32xf32>
    %94 = arith.mulf %88, %92 : vector<8x32xf32>
    %95 = arith.addf %93, %94 : vector<8x32xf32>
    %96 = math.tanh %95 : vector<8x32xf32>
    %97 = arith.mulf %90, %96 : vector<8x32xf32>
    %98 = arith.truncf %97 : vector<8x32xf32> to vector<8x32xbf16>
    %cst_28 = arith.constant dense<0.000000e+00> : vector<8x128xf32>
    %99 = tpu.matmul %98, %13, %cst_28 {dimension_numbers = #tpu.dot_dimension_numbers<[1], [0], [0], [1], [0, 0, 1, 1], [], []>} : vector<8x32xbf16>, vector<32x128xbf16>, vector<8x128xf32> -> vector<8x128xf32>
    %100 = vector.extract_strided_slice %8 {offsets = [16, 0], sizes = [8, 128], strides = [1, 1]} : vector<64x128xf32> to vector<8x128xf32>
    %101 = arith.addf %100, %79 : vector<8x128xf32>
    %102 = arith.negf %101 : vector<8x128xf32>
    %103 = math.exp %102 : vector<8x128xf32>
    %cst_29 = arith.constant 1.000000e+00 : f32
    %104 = vector.broadcast %cst_29 : f32 to vector<8x128xf32>
    %105 = arith.addf %104, %103 : vector<8x128xf32>
    %106 = arith.divf %104, %105 : vector<8x128xf32>
    %107 = vector.extract_strided_slice %106 {offsets = [0, 0], sizes = [8, 32], strides = [1, 1]} : vector<8x128xf32> to vector<8x32xf32>
    %108 = vector.extract_strided_slice %106 {offsets = [0, 32], sizes = [8, 32], strides = [1, 1]} : vector<8x128xf32> to vector<8x32xf32>
    %109 = vector.extract_strided_slice %106 {offsets = [0, 96], sizes = [8, 32], strides = [1, 1]} : vector<8x128xf32> to vector<8x32xf32>
    %110 = vector.extract_strided_slice %101 {offsets = [0, 64], sizes = [8, 32], strides = [1, 1]} : vector<8x128xf32> to vector<8x32xf32>
    %111 = math.tanh %110 : vector<8x32xf32>
    %112 = arith.mulf %108, %74 : vector<8x32xf32>
    %113 = arith.mulf %107, %111 : vector<8x32xf32>
    %114 = arith.addf %112, %113 : vector<8x32xf32>
    %115 = math.tanh %114 : vector<8x32xf32>
    %116 = arith.mulf %109, %115 : vector<8x32xf32>
    %117 = arith.truncf %116 : vector<8x32xf32> to vector<8x32xbf16>
    %cst_30 = arith.constant dense<0.000000e+00> : vector<8x256xf32>
    %118 = tpu.matmul %117, %12, %cst_30 {dimension_numbers = #tpu.dot_dimension_numbers<[1], [0], [0], [1], [0, 0, 1, 1], [], []>} : vector<8x32xbf16>, vector<32x256xbf16>, vector<8x256xf32> -> vector<8x256xf32>
    %119 = vector.extract_strided_slice %118 {offsets = [0, 0], sizes = [8, 128], strides = [1, 1]} : vector<8x256xf32> to vector<8x128xf32>
    %120 = vector.extract_strided_slice %118 {offsets = [0, 128], sizes = [8, 128], strides = [1, 1]} : vector<8x256xf32> to vector<8x128xf32>
    %121 = arith.addf %120, %99 : vector<8x128xf32>
    %122 = arith.addf %121, %11 : vector<8x128xf32>
    %123 = arith.negf %122 : vector<8x128xf32>
    %124 = math.exp %123 : vector<8x128xf32>
    %cst_31 = arith.constant 1.000000e+00 : f32
    %125 = vector.broadcast %cst_31 : f32 to vector<8x128xf32>
    %126 = arith.addf %125, %124 : vector<8x128xf32>
    %127 = arith.divf %125, %126 : vector<8x128xf32>
    %128 = vector.extract_strided_slice %127 {offsets = [0, 0], sizes = [8, 32], strides = [1, 1]} : vector<8x128xf32> to vector<8x32xf32>
    %129 = vector.extract_strided_slice %127 {offsets = [0, 32], sizes = [8, 32], strides = [1, 1]} : vector<8x128xf32> to vector<8x32xf32>
    %130 = vector.extract_strided_slice %127 {offsets = [0, 96], sizes = [8, 32], strides = [1, 1]} : vector<8x128xf32> to vector<8x32xf32>
    %131 = vector.extract_strided_slice %122 {offsets = [0, 64], sizes = [8, 32], strides = [1, 1]} : vector<8x128xf32> to vector<8x32xf32>
    %132 = math.tanh %131 : vector<8x32xf32>
    %133 = arith.mulf %129, %95 : vector<8x32xf32>
    %134 = arith.mulf %128, %132 : vector<8x32xf32>
    %135 = arith.addf %133, %134 : vector<8x32xf32>
    %136 = math.tanh %135 : vector<8x32xf32>
    %137 = arith.mulf %130, %136 : vector<8x32xf32>
    %138 = arith.truncf %137 : vector<8x32xf32> to vector<8x32xbf16>
    %cst_32 = arith.constant dense<0.000000e+00> : vector<8x128xf32>
    %139 = tpu.matmul %138, %13, %cst_32 {dimension_numbers = #tpu.dot_dimension_numbers<[1], [0], [0], [1], [0, 0, 1, 1], [], []>} : vector<8x32xbf16>, vector<32x128xbf16>, vector<8x128xf32> -> vector<8x128xf32>
    %140 = vector.extract_strided_slice %8 {offsets = [24, 0], sizes = [8, 128], strides = [1, 1]} : vector<64x128xf32> to vector<8x128xf32>
    %141 = arith.addf %140, %119 : vector<8x128xf32>
    %142 = arith.negf %141 : vector<8x128xf32>
    %143 = math.exp %142 : vector<8x128xf32>
    %cst_33 = arith.constant 1.000000e+00 : f32
    %144 = vector.broadcast %cst_33 : f32 to vector<8x128xf32>
    %145 = arith.addf %144, %143 : vector<8x128xf32>
    %146 = arith.divf %144, %145 : vector<8x128xf32>
    %147 = vector.extract_strided_slice %146 {offsets = [0, 0], sizes = [8, 32], strides = [1, 1]} : vector<8x128xf32> to vector<8x32xf32>
    %148 = vector.extract_strided_slice %146 {offsets = [0, 32], sizes = [8, 32], strides = [1, 1]} : vector<8x128xf32> to vector<8x32xf32>
    %149 = vector.extract_strided_slice %146 {offsets = [0, 96], sizes = [8, 32], strides = [1, 1]} : vector<8x128xf32> to vector<8x32xf32>
    %150 = vector.extract_strided_slice %141 {offsets = [0, 64], sizes = [8, 32], strides = [1, 1]} : vector<8x128xf32> to vector<8x32xf32>
    %151 = math.tanh %150 : vector<8x32xf32>
    %152 = arith.mulf %148, %114 : vector<8x32xf32>
    %153 = arith.mulf %147, %151 : vector<8x32xf32>
    %154 = arith.addf %152, %153 : vector<8x32xf32>
    %155 = math.tanh %154 : vector<8x32xf32>
    %156 = arith.mulf %149, %155 : vector<8x32xf32>
    %157 = arith.truncf %156 : vector<8x32xf32> to vector<8x32xbf16>
    %cst_34 = arith.constant dense<0.000000e+00> : vector<8x256xf32>
    %158 = tpu.matmul %157, %12, %cst_34 {dimension_numbers = #tpu.dot_dimension_numbers<[1], [0], [0], [1], [0, 0, 1, 1], [], []>} : vector<8x32xbf16>, vector<32x256xbf16>, vector<8x256xf32> -> vector<8x256xf32>
    %159 = vector.extract_strided_slice %158 {offsets = [0, 0], sizes = [8, 128], strides = [1, 1]} : vector<8x256xf32> to vector<8x128xf32>
    %160 = vector.extract_strided_slice %158 {offsets = [0, 128], sizes = [8, 128], strides = [1, 1]} : vector<8x256xf32> to vector<8x128xf32>
    %161 = arith.addf %160, %139 : vector<8x128xf32>
    %162 = arith.addf %161, %11 : vector<8x128xf32>
    %163 = arith.negf %162 : vector<8x128xf32>
    %164 = math.exp %163 : vector<8x128xf32>
    %cst_35 = arith.constant 1.000000e+00 : f32
    %165 = vector.broadcast %cst_35 : f32 to vector<8x128xf32>
    %166 = arith.addf %165, %164 : vector<8x128xf32>
    %167 = arith.divf %165, %166 : vector<8x128xf32>
    %168 = vector.extract_strided_slice %167 {offsets = [0, 0], sizes = [8, 32], strides = [1, 1]} : vector<8x128xf32> to vector<8x32xf32>
    %169 = vector.extract_strided_slice %167 {offsets = [0, 32], sizes = [8, 32], strides = [1, 1]} : vector<8x128xf32> to vector<8x32xf32>
    %170 = vector.extract_strided_slice %167 {offsets = [0, 96], sizes = [8, 32], strides = [1, 1]} : vector<8x128xf32> to vector<8x32xf32>
    %171 = vector.extract_strided_slice %162 {offsets = [0, 64], sizes = [8, 32], strides = [1, 1]} : vector<8x128xf32> to vector<8x32xf32>
    %172 = math.tanh %171 : vector<8x32xf32>
    %173 = arith.mulf %169, %135 : vector<8x32xf32>
    %174 = arith.mulf %168, %172 : vector<8x32xf32>
    %175 = arith.addf %173, %174 : vector<8x32xf32>
    %176 = math.tanh %175 : vector<8x32xf32>
    %177 = arith.mulf %170, %176 : vector<8x32xf32>
    %178 = arith.truncf %177 : vector<8x32xf32> to vector<8x32xbf16>
    %cst_36 = arith.constant dense<0.000000e+00> : vector<8x128xf32>
    %179 = tpu.matmul %178, %13, %cst_36 {dimension_numbers = #tpu.dot_dimension_numbers<[1], [0], [0], [1], [0, 0, 1, 1], [], []>} : vector<8x32xbf16>, vector<32x128xbf16>, vector<8x128xf32> -> vector<8x128xf32>
    %180 = vector.extract_strided_slice %8 {offsets = [32, 0], sizes = [8, 128], strides = [1, 1]} : vector<64x128xf32> to vector<8x128xf32>
    %181 = arith.addf %180, %159 : vector<8x128xf32>
    %182 = arith.negf %181 : vector<8x128xf32>
    %183 = math.exp %182 : vector<8x128xf32>
    %cst_37 = arith.constant 1.000000e+00 : f32
    %184 = vector.broadcast %cst_37 : f32 to vector<8x128xf32>
    %185 = arith.addf %184, %183 : vector<8x128xf32>
    %186 = arith.divf %184, %185 : vector<8x128xf32>
    %187 = vector.extract_strided_slice %186 {offsets = [0, 0], sizes = [8, 32], strides = [1, 1]} : vector<8x128xf32> to vector<8x32xf32>
    %188 = vector.extract_strided_slice %186 {offsets = [0, 32], sizes = [8, 32], strides = [1, 1]} : vector<8x128xf32> to vector<8x32xf32>
    %189 = vector.extract_strided_slice %186 {offsets = [0, 96], sizes = [8, 32], strides = [1, 1]} : vector<8x128xf32> to vector<8x32xf32>
    %190 = vector.extract_strided_slice %181 {offsets = [0, 64], sizes = [8, 32], strides = [1, 1]} : vector<8x128xf32> to vector<8x32xf32>
    %191 = math.tanh %190 : vector<8x32xf32>
    %192 = arith.mulf %188, %154 : vector<8x32xf32>
    %193 = arith.mulf %187, %191 : vector<8x32xf32>
    %194 = arith.addf %192, %193 : vector<8x32xf32>
    %195 = math.tanh %194 : vector<8x32xf32>
    %196 = arith.mulf %189, %195 : vector<8x32xf32>
    %197 = arith.truncf %196 : vector<8x32xf32> to vector<8x32xbf16>
    %cst_38 = arith.constant dense<0.000000e+00> : vector<8x256xf32>
    %198 = tpu.matmul %197, %12, %cst_38 {dimension_numbers = #tpu.dot_dimension_numbers<[1], [0], [0], [1], [0, 0, 1, 1], [], []>} : vector<8x32xbf16>, vector<32x256xbf16>, vector<8x256xf32> -> vector<8x256xf32>
    %199 = vector.extract_strided_slice %198 {offsets = [0, 0], sizes = [8, 128], strides = [1, 1]} : vector<8x256xf32> to vector<8x128xf32>
    %200 = vector.extract_strided_slice %198 {offsets = [0, 128], sizes = [8, 128], strides = [1, 1]} : vector<8x256xf32> to vector<8x128xf32>
    %201 = arith.addf %200, %179 : vector<8x128xf32>
    %202 = arith.addf %201, %11 : vector<8x128xf32>
    %203 = arith.negf %202 : vector<8x128xf32>
    %204 = math.exp %203 : vector<8x128xf32>
    %cst_39 = arith.constant 1.000000e+00 : f32
    %205 = vector.broadcast %cst_39 : f32 to vector<8x128xf32>
    %206 = arith.addf %205, %204 : vector<8x128xf32>
    %207 = arith.divf %205, %206 : vector<8x128xf32>
    %208 = vector.extract_strided_slice %207 {offsets = [0, 0], sizes = [8, 32], strides = [1, 1]} : vector<8x128xf32> to vector<8x32xf32>
    %209 = vector.extract_strided_slice %207 {offsets = [0, 32], sizes = [8, 32], strides = [1, 1]} : vector<8x128xf32> to vector<8x32xf32>
    %210 = vector.extract_strided_slice %207 {offsets = [0, 96], sizes = [8, 32], strides = [1, 1]} : vector<8x128xf32> to vector<8x32xf32>
    %211 = vector.extract_strided_slice %202 {offsets = [0, 64], sizes = [8, 32], strides = [1, 1]} : vector<8x128xf32> to vector<8x32xf32>
    %212 = math.tanh %211 : vector<8x32xf32>
    %213 = arith.mulf %209, %175 : vector<8x32xf32>
    %214 = arith.mulf %208, %212 : vector<8x32xf32>
    %215 = arith.addf %213, %214 : vector<8x32xf32>
    %216 = math.tanh %215 : vector<8x32xf32>
    %217 = arith.mulf %210, %216 : vector<8x32xf32>
    %218 = arith.truncf %217 : vector<8x32xf32> to vector<8x32xbf16>
    %cst_40 = arith.constant dense<0.000000e+00> : vector<8x128xf32>
    %219 = tpu.matmul %218, %13, %cst_40 {dimension_numbers = #tpu.dot_dimension_numbers<[1], [0], [0], [1], [0, 0, 1, 1], [], []>} : vector<8x32xbf16>, vector<32x128xbf16>, vector<8x128xf32> -> vector<8x128xf32>
    %220 = vector.extract_strided_slice %8 {offsets = [40, 0], sizes = [8, 128], strides = [1, 1]} : vector<64x128xf32> to vector<8x128xf32>
    %221 = arith.addf %220, %199 : vector<8x128xf32>
    %222 = arith.negf %221 : vector<8x128xf32>
    %223 = math.exp %222 : vector<8x128xf32>
    %cst_41 = arith.constant 1.000000e+00 : f32
    %224 = vector.broadcast %cst_41 : f32 to vector<8x128xf32>
    %225 = arith.addf %224, %223 : vector<8x128xf32>
    %226 = arith.divf %224, %225 : vector<8x128xf32>
    %227 = vector.extract_strided_slice %226 {offsets = [0, 0], sizes = [8, 32], strides = [1, 1]} : vector<8x128xf32> to vector<8x32xf32>
    %228 = vector.extract_strided_slice %226 {offsets = [0, 32], sizes = [8, 32], strides = [1, 1]} : vector<8x128xf32> to vector<8x32xf32>
    %229 = vector.extract_strided_slice %226 {offsets = [0, 96], sizes = [8, 32], strides = [1, 1]} : vector<8x128xf32> to vector<8x32xf32>
    %230 = vector.extract_strided_slice %221 {offsets = [0, 64], sizes = [8, 32], strides = [1, 1]} : vector<8x128xf32> to vector<8x32xf32>
    %231 = math.tanh %230 : vector<8x32xf32>
    %232 = arith.mulf %228, %194 : vector<8x32xf32>
    %233 = arith.mulf %227, %231 : vector<8x32xf32>
    %234 = arith.addf %232, %233 : vector<8x32xf32>
    %235 = math.tanh %234 : vector<8x32xf32>
    %236 = arith.mulf %229, %235 : vector<8x32xf32>
    %237 = arith.truncf %236 : vector<8x32xf32> to vector<8x32xbf16>
    %cst_42 = arith.constant dense<0.000000e+00> : vector<8x256xf32>
    %238 = tpu.matmul %237, %12, %cst_42 {dimension_numbers = #tpu.dot_dimension_numbers<[1], [0], [0], [1], [0, 0, 1, 1], [], []>} : vector<8x32xbf16>, vector<32x256xbf16>, vector<8x256xf32> -> vector<8x256xf32>
    %239 = vector.extract_strided_slice %238 {offsets = [0, 0], sizes = [8, 128], strides = [1, 1]} : vector<8x256xf32> to vector<8x128xf32>
    %240 = vector.extract_strided_slice %238 {offsets = [0, 128], sizes = [8, 128], strides = [1, 1]} : vector<8x256xf32> to vector<8x128xf32>
    %241 = arith.addf %240, %219 : vector<8x128xf32>
    %242 = arith.addf %241, %11 : vector<8x128xf32>
    %243 = arith.negf %242 : vector<8x128xf32>
    %244 = math.exp %243 : vector<8x128xf32>
    %cst_43 = arith.constant 1.000000e+00 : f32
    %245 = vector.broadcast %cst_43 : f32 to vector<8x128xf32>
    %246 = arith.addf %245, %244 : vector<8x128xf32>
    %247 = arith.divf %245, %246 : vector<8x128xf32>
    %248 = vector.extract_strided_slice %247 {offsets = [0, 0], sizes = [8, 32], strides = [1, 1]} : vector<8x128xf32> to vector<8x32xf32>
    %249 = vector.extract_strided_slice %247 {offsets = [0, 32], sizes = [8, 32], strides = [1, 1]} : vector<8x128xf32> to vector<8x32xf32>
    %250 = vector.extract_strided_slice %247 {offsets = [0, 96], sizes = [8, 32], strides = [1, 1]} : vector<8x128xf32> to vector<8x32xf32>
    %251 = vector.extract_strided_slice %242 {offsets = [0, 64], sizes = [8, 32], strides = [1, 1]} : vector<8x128xf32> to vector<8x32xf32>
    %252 = math.tanh %251 : vector<8x32xf32>
    %253 = arith.mulf %249, %215 : vector<8x32xf32>
    %254 = arith.mulf %248, %252 : vector<8x32xf32>
    %255 = arith.addf %253, %254 : vector<8x32xf32>
    %256 = math.tanh %255 : vector<8x32xf32>
    %257 = arith.mulf %250, %256 : vector<8x32xf32>
    %258 = arith.truncf %257 : vector<8x32xf32> to vector<8x32xbf16>
    %cst_44 = arith.constant dense<0.000000e+00> : vector<8x128xf32>
    %259 = tpu.matmul %258, %13, %cst_44 {dimension_numbers = #tpu.dot_dimension_numbers<[1], [0], [0], [1], [0, 0, 1, 1], [], []>} : vector<8x32xbf16>, vector<32x128xbf16>, vector<8x128xf32> -> vector<8x128xf32>
    %260 = vector.extract_strided_slice %8 {offsets = [48, 0], sizes = [8, 128], strides = [1, 1]} : vector<64x128xf32> to vector<8x128xf32>
    %261 = arith.addf %260, %239 : vector<8x128xf32>
    %262 = arith.negf %261 : vector<8x128xf32>
    %263 = math.exp %262 : vector<8x128xf32>
    %cst_45 = arith.constant 1.000000e+00 : f32
    %264 = vector.broadcast %cst_45 : f32 to vector<8x128xf32>
    %265 = arith.addf %264, %263 : vector<8x128xf32>
    %266 = arith.divf %264, %265 : vector<8x128xf32>
    %267 = vector.extract_strided_slice %266 {offsets = [0, 0], sizes = [8, 32], strides = [1, 1]} : vector<8x128xf32> to vector<8x32xf32>
    %268 = vector.extract_strided_slice %266 {offsets = [0, 32], sizes = [8, 32], strides = [1, 1]} : vector<8x128xf32> to vector<8x32xf32>
    %269 = vector.extract_strided_slice %266 {offsets = [0, 96], sizes = [8, 32], strides = [1, 1]} : vector<8x128xf32> to vector<8x32xf32>
    %270 = vector.extract_strided_slice %261 {offsets = [0, 64], sizes = [8, 32], strides = [1, 1]} : vector<8x128xf32> to vector<8x32xf32>
    %271 = math.tanh %270 : vector<8x32xf32>
    %272 = arith.mulf %268, %234 : vector<8x32xf32>
    %273 = arith.mulf %267, %271 : vector<8x32xf32>
    %274 = arith.addf %272, %273 : vector<8x32xf32>
    %275 = math.tanh %274 : vector<8x32xf32>
    %276 = arith.mulf %269, %275 : vector<8x32xf32>
    %277 = arith.truncf %276 : vector<8x32xf32> to vector<8x32xbf16>
    %cst_46 = arith.constant dense<0.000000e+00> : vector<8x256xf32>
    %278 = tpu.matmul %277, %12, %cst_46 {dimension_numbers = #tpu.dot_dimension_numbers<[1], [0], [0], [1], [0, 0, 1, 1], [], []>} : vector<8x32xbf16>, vector<32x256xbf16>, vector<8x256xf32> -> vector<8x256xf32>
    %279 = vector.extract_strided_slice %278 {offsets = [0, 0], sizes = [8, 128], strides = [1, 1]} : vector<8x256xf32> to vector<8x128xf32>
    %280 = vector.extract_strided_slice %278 {offsets = [0, 128], sizes = [8, 128], strides = [1, 1]} : vector<8x256xf32> to vector<8x128xf32>
    %281 = arith.addf %280, %259 : vector<8x128xf32>
    %282 = arith.addf %281, %11 : vector<8x128xf32>
    %283 = arith.negf %282 : vector<8x128xf32>
    %284 = math.exp %283 : vector<8x128xf32>
    %cst_47 = arith.constant 1.000000e+00 : f32
    %285 = vector.broadcast %cst_47 : f32 to vector<8x128xf32>
    %286 = arith.addf %285, %284 : vector<8x128xf32>
    %287 = arith.divf %285, %286 : vector<8x128xf32>
    %288 = vector.extract_strided_slice %287 {offsets = [0, 0], sizes = [8, 32], strides = [1, 1]} : vector<8x128xf32> to vector<8x32xf32>
    %289 = vector.extract_strided_slice %287 {offsets = [0, 32], sizes = [8, 32], strides = [1, 1]} : vector<8x128xf32> to vector<8x32xf32>
    %290 = vector.extract_strided_slice %287 {offsets = [0, 96], sizes = [8, 32], strides = [1, 1]} : vector<8x128xf32> to vector<8x32xf32>
    %291 = vector.extract_strided_slice %282 {offsets = [0, 64], sizes = [8, 32], strides = [1, 1]} : vector<8x128xf32> to vector<8x32xf32>
    %292 = math.tanh %291 : vector<8x32xf32>
    %293 = arith.mulf %289, %255 : vector<8x32xf32>
    %294 = arith.mulf %288, %292 : vector<8x32xf32>
    %295 = arith.addf %293, %294 : vector<8x32xf32>
    %296 = math.tanh %295 : vector<8x32xf32>
    %297 = arith.mulf %290, %296 : vector<8x32xf32>
    %298 = arith.truncf %297 : vector<8x32xf32> to vector<8x32xbf16>
    %cst_48 = arith.constant dense<0.000000e+00> : vector<8x128xf32>
    %299 = tpu.matmul %298, %13, %cst_48 {dimension_numbers = #tpu.dot_dimension_numbers<[1], [0], [0], [1], [0, 0, 1, 1], [], []>} : vector<8x32xbf16>, vector<32x128xbf16>, vector<8x128xf32> -> vector<8x128xf32>
    %300 = vector.extract_strided_slice %8 {offsets = [56, 0], sizes = [8, 128], strides = [1, 1]} : vector<64x128xf32> to vector<8x128xf32>
    %301 = arith.addf %300, %279 : vector<8x128xf32>
    %302 = arith.negf %301 : vector<8x128xf32>
    %303 = math.exp %302 : vector<8x128xf32>
    %cst_49 = arith.constant 1.000000e+00 : f32
    %304 = vector.broadcast %cst_49 : f32 to vector<8x128xf32>
    %305 = arith.addf %304, %303 : vector<8x128xf32>
    %306 = arith.divf %304, %305 : vector<8x128xf32>
    %307 = vector.extract_strided_slice %306 {offsets = [0, 0], sizes = [8, 32], strides = [1, 1]} : vector<8x128xf32> to vector<8x32xf32>
    %308 = vector.extract_strided_slice %306 {offsets = [0, 32], sizes = [8, 32], strides = [1, 1]} : vector<8x128xf32> to vector<8x32xf32>
    %309 = vector.extract_strided_slice %306 {offsets = [0, 96], sizes = [8, 32], strides = [1, 1]} : vector<8x128xf32> to vector<8x32xf32>
    %310 = vector.extract_strided_slice %301 {offsets = [0, 64], sizes = [8, 32], strides = [1, 1]} : vector<8x128xf32> to vector<8x32xf32>
    %311 = math.tanh %310 : vector<8x32xf32>
    %312 = arith.mulf %308, %274 : vector<8x32xf32>
    %313 = arith.mulf %307, %311 : vector<8x32xf32>
    %314 = arith.addf %312, %313 : vector<8x32xf32>
    %315 = math.tanh %314 : vector<8x32xf32>
    %316 = arith.mulf %309, %315 : vector<8x32xf32>
    %317 = arith.truncf %316 : vector<8x32xf32> to vector<8x32xbf16>
    %cst_50 = arith.constant dense<0.000000e+00> : vector<8x256xf32>
    %318 = tpu.matmul %317, %12, %cst_50 {dimension_numbers = #tpu.dot_dimension_numbers<[1], [0], [0], [1], [0, 0, 1, 1], [], []>} : vector<8x32xbf16>, vector<32x256xbf16>, vector<8x256xf32> -> vector<8x256xf32>
    %319 = vector.extract_strided_slice %318 {offsets = [0, 0], sizes = [8, 128], strides = [1, 1]} : vector<8x256xf32> to vector<8x128xf32>
    %320 = vector.extract_strided_slice %318 {offsets = [0, 128], sizes = [8, 128], strides = [1, 1]} : vector<8x256xf32> to vector<8x128xf32>
    %321 = arith.addf %320, %299 : vector<8x128xf32>
    %322 = arith.addf %321, %11 : vector<8x128xf32>
    %323 = arith.negf %322 : vector<8x128xf32>
    %324 = math.exp %323 : vector<8x128xf32>
    %cst_51 = arith.constant 1.000000e+00 : f32
    %325 = vector.broadcast %cst_51 : f32 to vector<8x128xf32>
    %326 = arith.addf %325, %324 : vector<8x128xf32>
    %327 = arith.divf %325, %326 : vector<8x128xf32>
    %328 = vector.extract_strided_slice %327 {offsets = [0, 0], sizes = [8, 32], strides = [1, 1]} : vector<8x128xf32> to vector<8x32xf32>
    %329 = vector.extract_strided_slice %327 {offsets = [0, 32], sizes = [8, 32], strides = [1, 1]} : vector<8x128xf32> to vector<8x32xf32>
    %330 = vector.extract_strided_slice %327 {offsets = [0, 96], sizes = [8, 32], strides = [1, 1]} : vector<8x128xf32> to vector<8x32xf32>
    %331 = vector.extract_strided_slice %322 {offsets = [0, 64], sizes = [8, 32], strides = [1, 1]} : vector<8x128xf32> to vector<8x32xf32>
    %332 = math.tanh %331 : vector<8x32xf32>
    %333 = arith.mulf %329, %295 : vector<8x32xf32>
    %334 = arith.mulf %328, %332 : vector<8x32xf32>
    %335 = arith.addf %333, %334 : vector<8x32xf32>
    %336 = math.tanh %335 : vector<8x32xf32>
    %337 = arith.mulf %330, %336 : vector<8x32xf32>
    %c0_52 = arith.constant 0 : index
    %c0_53 = arith.constant 0 : index
    %338 = vector.load %arg14[%c0_52, %c0_53] : memref<8x32xf32, #tpu.memory_space<vmem>>, vector<8x32xf32>
    tpu.vector_store %arg14[%c0_52, %c0_53], %316 {strides = array<i32>} : memref<8x32xf32, #tpu.memory_space<vmem>>, vector<8x32xf32>,
    %c0_54 = arith.constant 0 : index
    %c0_55 = arith.constant 0 : index
    %339 = vector.load %arg15[%c0_54, %c0_55] : memref<8x32xf32, #tpu.memory_space<vmem>>, vector<8x32xf32>
    tpu.vector_store %arg15[%c0_54, %c0_55], %314 {strides = array<i32>} : memref<8x32xf32, #tpu.memory_space<vmem>>, vector<8x32xf32>,
    %c0_56 = arith.constant 0 : index
    %c0_57 = arith.constant 0 : index
    %340 = vector.load %arg16[%c0_56, %c0_57] : memref<8x32xf32, #tpu.memory_space<vmem>>, vector<8x32xf32>
    tpu.vector_store %arg16[%c0_56, %c0_57], %337 {strides = array<i32>} : memref<8x32xf32, #tpu.memory_space<vmem>>, vector<8x32xf32>,
    %c0_58 = arith.constant 0 : index
    %c0_59 = arith.constant 0 : index
    %341 = vector.load %arg17[%c0_58, %c0_59] : memref<8x32xf32, #tpu.memory_space<vmem>>, vector<8x32xf32>
    tpu.vector_store %arg17[%c0_58, %c0_59], %335 {strides = array<i32>} : memref<8x32xf32, #tpu.memory_space<vmem>>, vector<8x32xf32>,
    %c0_60 = arith.constant 0 : index
    %c0_61 = arith.constant 0 : index
    %342 = vector.load %arg18[%c0_60, %c0_61] : memref<8x128xf32, #tpu.memory_space<vmem>>, vector<8x128xf32>
    tpu.vector_store %arg18[%c0_60, %c0_61], %319 {strides = array<i32>} : memref<8x128xf32, #tpu.memory_space<vmem>>, vector<8x128xf32>,
    %c0_i32_62 = arith.constant 0 : i32
    %343 = arith.cmpi eq, %arg0, %c0_i32_62 : i32
    %344 = arith.extui %343 : i1 to i32
    %c0_i32_63 = arith.constant 0 : i32
    %345 = arith.cmpi ne, %344, %c0_i32_63 : i32
    scf.if %345 {
      %c0_64 = arith.constant 0 : index
      %c0_65 = arith.constant 0 : index
      %346 = vector.load %arg9[%c0_64, %c0_65] : memref<1x32xf32, #tpu.memory_space<vmem>>, vector<1x32xf32>
      %347 = vector.broadcast %346 : vector<1x32xf32> to vector<8x32xf32>
      %348 = arith.mulf %337, %347 : vector<8x32xf32>
      %cst_66 = arith.constant dense<0.000000e+00> : vector<8xf32>
      %349 = vector.multi_reduction <add>, %348, %cst_66 [1] : vector<8x32xf32> to vector<8xf32>
      %350 = vector.shape_cast %349 : vector<8xf32> to vector<8x1xf32>
      %c0_67 = arith.constant 0 : index
      %c0_68 = arith.constant 0 : index
      %351 = vector.load %arg10[%c0_67, %c0_68] : memref<1x1xf32, #tpu.memory_space<vmem>>, vector<1x1xf32>
      %352 = vector.broadcast %351 : vector<1x1xf32> to vector<8x1xf32>
      %353 = arith.addf %350, %352 : vector<8x1xf32>
      %354 = arith.negf %353 : vector<8x1xf32>
      %355 = math.exp %354 : vector<8x1xf32>
      %cst_69 = arith.constant 1.000000e+00 : f32
      %356 = vector.broadcast %cst_69 : f32 to vector<8x1xf32>
      %357 = arith.addf %356, %355 : vector<8x1xf32>
      %358 = arith.divf %356, %357 : vector<8x1xf32>
      %c0_70 = arith.constant 0 : index
      %c0_71 = arith.constant 0 : index
      %359 = vector.load %arg11[%c0_70, %c0_71] : memref<8x1xf32, #tpu.memory_space<vmem>>, vector<8x1xf32>
      tpu.vector_store %arg11[%c0_70, %c0_71], %358 {strides = array<i32>} : memref<8x1xf32, #tpu.memory_space<vmem>>, vector<8x1xf32>,
      %c0_72 = arith.constant 0 : index
      %c0_73 = arith.constant 0 : index
      %c0_74 = arith.constant 0 : index
      %360 = vector.load %arg12[%c0_72, %c0_73, %c0_74] : memref<2x8x32xf32, #tpu.memory_space<vmem>>, vector<1x8x32xf32>
      %361 = vector.shape_cast %360 : vector<1x8x32xf32> to vector<8x32xf32>
      %362 = vector.shape_cast %316 : vector<8x32xf32> to vector<1x8x32xf32>
      tpu.vector_store %arg12[%c0_72, %c0_73, %c0_74], %362 {strides = array<i32>} : memref<2x8x32xf32, #tpu.memory_space<vmem>>, vector<1x8x32xf32>,
      %c1 = arith.constant 1 : index
      %c0_75 = arith.constant 0 : index
      %c0_76 = arith.constant 0 : index
      %363 = vector.load %arg12[%c1, %c0_75, %c0_76] : memref<2x8x32xf32, #tpu.memory_space<vmem>>, vector<1x8x32xf32>
      %364 = vector.shape_cast %363 : vector<1x8x32xf32> to vector<8x32xf32>
      %365 = vector.shape_cast %337 : vector<8x32xf32> to vector<1x8x32xf32>
      tpu.vector_store %arg12[%c1, %c0_75, %c0_76], %365 {strides = array<i32>} : memref<2x8x32xf32, #tpu.memory_space<vmem>>, vector<1x8x32xf32>,
      %c0_77 = arith.constant 0 : index
      %c0_78 = arith.constant 0 : index
      %c0_79 = arith.constant 0 : index
      %366 = vector.load %arg13[%c0_77, %c0_78, %c0_79] : memref<2x8x32xf32, #tpu.memory_space<vmem>>, vector<1x8x32xf32>
      %367 = vector.shape_cast %366 : vector<1x8x32xf32> to vector<8x32xf32>
      %368 = vector.shape_cast %314 : vector<8x32xf32> to vector<1x8x32xf32>
      tpu.vector_store %arg13[%c0_77, %c0_78, %c0_79], %368 {strides = array<i32>} : memref<2x8x32xf32, #tpu.memory_space<vmem>>, vector<1x8x32xf32>,
      %c1_80 = arith.constant 1 : index
      %c0_81 = arith.constant 0 : index
      %c0_82 = arith.constant 0 : index
      %369 = vector.load %arg13[%c1_80, %c0_81, %c0_82] : memref<2x8x32xf32, #tpu.memory_space<vmem>>, vector<1x8x32xf32>
      %370 = vector.shape_cast %369 : vector<1x8x32xf32> to vector<8x32xf32>
      %371 = vector.shape_cast %335 : vector<8x32xf32> to vector<1x8x32xf32>
      tpu.vector_store %arg13[%c1_80, %c0_81, %c0_82], %371 {strides = array<i32>} : memref<2x8x32xf32, #tpu.memory_space<vmem>>, vector<1x8x32xf32>,
    } else {
    }
    return
  }
  func.func @transform_0(%arg0: i32) -> (i32, i32) {
    %c0_i32 = arith.constant 0 : i32
    %c0_i32_0 = arith.constant 0 : i32
    return %arg0, %c0_i32 : i32, i32
  }
  func.func @transform_1(%arg0: i32) -> (i32, i32, i32) {
    %c0_i32 = arith.constant 0 : i32
    %c0_i32_0 = arith.constant 0 : i32
    %c0_i32_1 = arith.constant 0 : i32
    %c0_i32_2 = arith.constant 0 : i32
    return %c0_i32, %c0_i32_0, %c0_i32_1 : i32, i32, i32
  }
  func.func @transform_2(%arg0: i32) -> (i32, i32, i32) {
    %c0_i32 = arith.constant 0 : i32
    %c0_i32_0 = arith.constant 0 : i32
    %c0_i32_1 = arith.constant 0 : i32
    %c0_i32_2 = arith.constant 0 : i32
    return %c0_i32, %c0_i32_0, %c0_i32_1 : i32, i32, i32
  }
  func.func @transform_3(%arg0: i32) -> (i32, i32) {
    %c0_i32 = arith.constant 0 : i32
    %c0_i32_0 = arith.constant 0 : i32
    %c0_i32_1 = arith.constant 0 : i32
    return %c0_i32, %c0_i32_0 : i32, i32
  }
  func.func @transform_4(%arg0: i32) -> (i32, i32) {
    %c0_i32 = arith.constant 0 : i32
    %c0_i32_0 = arith.constant 0 : i32
    %c0_i32_1 = arith.constant 0 : i32
    return %c0_i32, %c0_i32_0 : i32, i32
  }
  func.func @transform_5(%arg0: i32) -> (i32, i32) {
    %c0_i32 = arith.constant 0 : i32
    %c0_i32_0 = arith.constant 0 : i32
    %c0_i32_1 = arith.constant 0 : i32
    return %c0_i32, %c0_i32_0 : i32, i32
  }
  func.func @transform_6(%arg0: i32) -> (i32, i32) {
    %c0_i32 = arith.constant 0 : i32
    %c0_i32_0 = arith.constant 0 : i32
    %c0_i32_1 = arith.constant 0 : i32
    return %c0_i32, %c0_i32_0 : i32, i32
  }
  func.func @transform_7(%arg0: i32) -> (i32, i32) {
    %c0_i32 = arith.constant 0 : i32
    %c0_i32_0 = arith.constant 0 : i32
    %c0_i32_1 = arith.constant 0 : i32
    return %c0_i32, %c0_i32_0 : i32, i32
  }
  func.func @transform_8(%arg0: i32) -> (i32, i32) {
    %c0_i32 = arith.constant 0 : i32
    %c0_i32_0 = arith.constant 0 : i32
    %c0_i32_1 = arith.constant 0 : i32
    return %c0_i32, %c0_i32_0 : i32, i32
  }
  func.func @transform_9(%arg0: i32) -> (i32, i32) {
    %c0_i32 = arith.constant 0 : i32
    %c0_i32_0 = arith.constant 0 : i32
    %c0_i32_1 = arith.constant 0 : i32
    return %c0_i32, %c0_i32_0 : i32, i32
  }
  func.func @transform_10(%arg0: i32) -> (i32, i32) {
    %c0_i32 = arith.constant 0 : i32
    %c0_i32_0 = arith.constant 0 : i32
    %c0_i32_1 = arith.constant 0 : i32
    return %c0_i32, %c0_i32_0 : i32, i32
  }
  func.func @transform_11(%arg0: i32) -> (i32, i32, i32) {
    %c0_i32 = arith.constant 0 : i32
    %c0_i32_0 = arith.constant 0 : i32
    %c0_i32_1 = arith.constant 0 : i32
    %c0_i32_2 = arith.constant 0 : i32
    return %c0_i32, %c0_i32_0, %c0_i32_1 : i32, i32, i32
  }
  func.func @transform_12(%arg0: i32) -> (i32, i32, i32) {
    %c0_i32 = arith.constant 0 : i32
    %c0_i32_0 = arith.constant 0 : i32
    %c0_i32_1 = arith.constant 0 : i32
    %c0_i32_2 = arith.constant 0 : i32
    return %c0_i32, %c0_i32_0, %c0_i32_1 : i32, i32, i32
  }
}

</mosaic_0001>

<llo_original>
// kernel: sentiment_forward.1
$region0: #{sentiment_forward.1}
  #allocation0 [shape = 'u32[]', space=smem, size = 0x4, offset = 0x4, fixed_abs, tag = 'smem constant byte address 0x4 - core index']
  #allocation1 [shape = 'u32[144,128]{1,0:T(1,128)}', space=vmem, size = 0x12000, scoped, tag = 'internal scratch']
  #allocation2 [shape = 'f32[8,32]{1,0:T(8,128)}', space=vmem, size = 0x1000, scoped, tag = 'scratch operand']
  #allocation3 [shape = 'f32[8,32]{1,0:T(8,128)}', space=vmem, size = 0x1000, scoped, tag = 'scratch operand']
  #allocation4 [shape = 'f32[8,32]{1,0:T(8,128)}', space=vmem, size = 0x1000, scoped, tag = 'scratch operand']
  #allocation5 [shape = 'f32[8,32]{1,0:T(8,128)}', space=vmem, size = 0x1000, scoped, tag = 'scratch operand']
  #allocation6 [shape = 'f32[8,128]{1,0:T(8,128)}', space=vmem, size = 0x1000, scoped, tag = 'scratch operand']
  #allocation7 [shape = 'f32[1,1]{1,0:T(1,128)S(1)}', space=vmem, size = 0x200, scoped, tag = 'scoped memory for sentiment_forward.1']
  %s0 = inlined_call_operand.vmem [shape: bf16[64,32], index: 0, kind: input, shape index: {}]
  %s1 = inlined_call_operand.vmem [shape: f32[2,8,32], index: 1, kind: input, shape index: {}, may-alias: {1,11}]
  %s2 = inlined_call_operand.vmem [shape: f32[2,8,32], index: 2, kind: input, shape index: {}, may-alias: {2,12}]
  %s3 = inlined_call_operand.vmem [shape: bf16[32,128], index: 3, kind: input, shape index: {}]
  %s4 = inlined_call_operand.vmem [shape: bf16[32,256], index: 4, kind: input, shape index: {}]
  %s5 = inlined_call_operand.vmem [shape: bf16[32,128], index: 5, kind: input, shape index: {}]
  %s6 = inlined_call_operand.vmem [shape: f32[1,128], index: 6, kind: input, shape index: {}]
  %s7 = inlined_call_operand.vmem [shape: f32[1,128], index: 7, kind: input, shape index: {}]
  %s8 = inlined_call_operand.vmem [shape: f32[1,32], index: 8, kind: input, shape index: {}]
  %s9 = inlined_call_operand.<no memory space> [shape: f32[1,1], index: 9, kind: input, shape index: {}]
  %s10 = inlined_call_operand.vmem [shape: f32[8,1], index: 10, kind: output, shape index: {0}]
  %s11 = inlined_call_operand.vmem [shape: f32[2,8,32], index: 11, kind: output, shape index: {1}, may-alias: {1,11}]
  %s12 = inlined_call_operand.vmem [shape: f32[2,8,32], index: 12, kind: output, shape index: {2}, may-alias: {2,12}]
  %13 = xla_tuple %s10, %s11, %s12
  %s14 = sld [smem:[#allocation0]]
  $region74: #{sentiment_forward.1} parent=0
    _
  %s16 = ssub.s32 1, %s14
  %s17 = scalar_select 0, %s16, %s14
  %v18 = vstv %s9
  %19 = vst [vmem:[#allocation7] sm:$0x1] %v18
  // Predicated region
  $region2: #{sentiment_forward.1} parent=0 // pred_check
    _
  $region3: #{sentiment_forward.1} parent=0 // pred_check_branch
    %21 = sbr.rel (0) target = $region5
  $region4: #{sentiment_forward.1} parent=0 // pred_region
    _
  $region5: #{sentiment_forward.1} parent=0 // pred_fallthru
    _
  // Predicated region
  $region6: #{sentiment_forward.1} parent=0 // pred_check
    _
  $region7: #{sentiment_forward.1} parent=0 // pred_check_branch
    %23 = sbr.rel (0) target = $region9
  $region8: #{sentiment_forward.1} parent=0 // pred_region
    _
  $region9: #{sentiment_forward.1} parent=0 // pred_fallthru
    _
  // Predicated region
  $region10: #{sentiment_forward.1} parent=0 // pred_check
    _
  $region11: #{sentiment_forward.1} parent=0 // pred_check_branch
    %25 = sbr.rel (0) target = $region13
  $region12: #{sentiment_forward.1} parent=0 // pred_region
    _
  $region13: #{sentiment_forward.1} parent=0 // pred_fallthru
    _
  // Predicated region
  $region14: #{sentiment_forward.1} parent=0 // pred_check
    _
  $region15: #{sentiment_forward.1} parent=0 // pred_check_branch
    %27 = sbr.rel (0) target = $region17
  $region16: #{sentiment_forward.1} parent=0 // pred_region
    _
  $region17: #{sentiment_forward.1} parent=0 // pred_fallthru
    _
  // Predicated region
  $region18: #{sentiment_forward.1} parent=0 // pred_check
    _
  $region19: #{sentiment_forward.1} parent=0 // pred_check_branch
    %29 = sbr.rel (0) target = $region21
  $region20: #{sentiment_forward.1} parent=0 // pred_region
    _
  $region21: #{sentiment_forward.1} parent=0 // pred_fallthru
    _
  // Predicated region
  $region22: #{sentiment_forward.1} parent=0 // pred_check
    _
  $region23: #{sentiment_forward.1} parent=0 // pred_check_branch
    %31 = sbr.rel (0) target = $region25
  $region24: #{sentiment_forward.1} parent=0 // pred_region
    _
  $region25: #{sentiment_forward.1} parent=0 // pred_fallthru
    _
  // Predicated region
  $region26: #{sentiment_forward.1} parent=0 // pred_check
    _
  $region27: #{sentiment_forward.1} parent=0 // pred_check_branch
    %33 = sbr.rel (0) target = $region29
  $region28: #{sentiment_forward.1} parent=0 // pred_region
    _
  $region29: #{sentiment_forward.1} parent=0 // pred_fallthru
    _
  // Predicated region
  $region30: #{sentiment_forward.1} parent=0 // pred_check
    _
  $region31: #{sentiment_forward.1} parent=0 // pred_check_branch
    %35 = sbr.rel (0) target = $region33
  $region32: #{sentiment_forward.1} parent=0 // pred_region
    _
  $region33: #{sentiment_forward.1} parent=0 // pred_fallthru
    _
  // Predicated region
  $region34: #{sentiment_forward.1} parent=0 // pred_check
    _
  $region35: #{sentiment_forward.1} parent=0 // pred_check_branch
    %37 = sbr.rel (0) target = $region37
  $region36: #{sentiment_forward.1} parent=0 // pred_region
    _
  $region37: #{sentiment_forward.1} parent=0 // pred_fallthru
    _
  // Predicated region
  $region38: #{sentiment_forward.1} parent=0 // pred_check
    _
  $region39: #{sentiment_forward.1} parent=0 // pred_check_branch
    %39 = sbr.rel (0) target = $region41
  $region40: #{sentiment_forward.1} parent=0 // pred_region
    _
  $region41: #{sentiment_forward.1} parent=0 // pred_fallthru
    _
  %p41 = scmp.eq.s32.totalorder 0, 0
  // Predicated region
  $region42: #{sentiment_forward.1} parent=0 // pred_check
    %p42 = pneg %p41
  $region43: #{sentiment_forward.1} parent=0 // pred_check_branch
    %44 = sbr.rel (%p42) target = $region45
  $region44: #{sentiment_forward.1} parent=0 // pred_region
    %v45 = vld [vmem:[%s1] sm:$0xff]
    %vm46 = vcmask 261120
    %47 = vst.msk [vmem:[#allocation2] sm:$0xff] %vm46, %v45
    %v48 = vld [vmem:[%s2] sm:$0xff]
    %49 = vst.msk [vmem:[#allocation3] sm:$0xff] %vm46, %v48
    %s50 = scalar_lea.vmem %s1, 8
    %v51 = vld [vmem:[%s50] sm:$0xff]
    %52 = vst.msk [vmem:[#allocation4] sm:$0xff] %vm46, %v51
    %s53 = scalar_lea.vmem %s2, 8
    %v54 = vld [vmem:[%s53] sm:$0xff]
    %55 = vst.msk [vmem:[#allocation5] sm:$0xff] %vm46, %v54
    %v56 = vld [vmem:[%s1] sm:$0xff]
    %v57 = vpack.c.bf16 %v56, %v56
    %v58 = vld [vmem:[%s4] sm:$0xf]
    %v59 = vld [vmem:[%s4 + $0x8] sm:$0xf]
    %v60 = vld [vmem:[%s4 + $0x10] sm:$0xf]
    %v61 = vld [vmem:[%s4 + $0x18] sm:$0xf]
    %v66 = vunpack.c.l.b16 %v58
    %v67 = vunpack.c.l.b16 %v59
    %v68 = vunpack.c.l.b16 %v60
    %v69 = vunpack.c.l.b16 %v61
    %v70 = vpack.c.b16 %v67, %v66
    %v71 = vpack.c.b16 %v69, %v68
    %v75 = vsel %vm46, %v57, 0
    %77 = vmatprep.subr.bf16.mxu0 0
    %78 = vmatpush1.bf16.msra.mxu0 0
    %79 = vmatprep.subr.bf16.mxu0 0
    %80 = vmatpush1.bf16.msra.mxu0 0
    %81 = vmatprep.subr.bf16.mxu0 0
    %82 = vmatpush1.bf16.msra.mxu0 0
    %83 = vmatprep.subr.bf16.mxu0 0
    %84 = vmatpush1.bf16.msra.mxu0 0
    %85 = vmatprep.subr.bf16.mxu0 0
    %86 = vmatpush1.bf16.msra.mxu0 0
    %87 = vmatprep.subr.bf16.mxu0 0
    %88 = vmatpush1.bf16.msra.mxu0 0
    %89 = vmatprep.subr.bf16.mxu0 0
    %90 = vmatpush1.bf16.msra.mxu0 %v71
    %91 = vmatprep.subr.bf16.mxu0 0
    %92 = vmatpush1.bf16.msra.mxu0 %v70
    %93 = vmatprep.subr.bf16.mxu0 0
    %94 = vmatpush2.bf16.msra.mxu0 0
    %95 = vmatprep.subr.bf16.mxu0 0
    %96 = vmatpush2.bf16.msra.mxu0 0
    %97 = vmatprep.subr.bf16.mxu0 0
    %98 = vmatpush2.bf16.msra.mxu0 0
    %99 = vmatprep.subr.bf16.mxu0 0
    %100 = vmatpush2.bf16.msra.mxu0 0
    %101 = vmatprep.subr.bf16.mxu0 0
    %102 = vmatpush2.bf16.msra.mxu0 0
    %103 = vmatprep.subr.bf16.mxu0 0
    %104 = vmatpush2.bf16.msra.mxu0 0
    %105 = vmatprep.subr.bf16.mxu0 0
    %106 = vmatpush2.bf16.msra.mxu0 0
    %107 = vmatprep.subr.bf16.mxu0 0
    %108 = vmatpush2.bf16.msra.mxu0 0
    %109 = vmatprep.mubr.bf16.mxu0 0
    %110 = vmatmul.mubr.bf16.gmra.mxu0 %v75
    %v111 = vpop.f32.mrf.mxu0
    %v112 = vadd.f32 0.0, %v111
    %v113 = vpop.f32.mrf.mxu0
    %v114 = vpop.f32.mrf.mxu0
    %v115 = vpop.f32.mrf.mxu0
    %116 = vdwg.mxu0
    %117 = vst [vmem:[#allocation6] sm:$0xff] %v112
  $region45: #{sentiment_forward.1} parent=0 // pred_fallthru
    _
  %v118 = vld [vmem:[%s0] sm:$0xf]
  %v119 = vld [vmem:[%s0 + $0x4] sm:$0xf]
  %v120 = vld [vmem:[%s0 + $0x8] sm:$0xf]
  %v121 = vld [vmem:[%s0 + $0xc] sm:$0xf]
  %v122 = vld [vmem:[%s0 + $0x10] sm:$0xf]
  %v123 = vld [vmem:[%s0 + $0x14] sm:$0xf]
  %v124 = vld [vmem:[%s0 + $0x18] sm:$0xf]
  %v125 = vld [vmem:[%s0 + $0x1c] sm:$0xf]
  %v126 = vld [vmem:[%s3] sm:$0xf]
  %v127 = vld [vmem:[%s3 + $0x4] sm:$0xf]
  %v128 = vld [vmem:[%s3 + $0x8] sm:$0xf]
  %v129 = vld [vmem:[%s3 + $0xc] sm:$0xf]
  %v130 = vld [vmem:[%s6] sm:$0x1]
  %v132 = vlaneseq
  %v133 = vshrl.u32 %v132, 7
  %v134 = vsub.s32 0, %v133
  %v135 = vrot.slane %v130, %v134
  %v145 = vunpack.c.l.b16 %v118
  %v146 = vunpack.c.l.b16 %v119
  %v147 = vunpack.c.l.b16 %v120
  %v148 = vunpack.c.l.b16 %v121
  %v149 = vunpack.c.l.b16 %v122
  %v150 = vunpack.c.l.b16 %v123
  %v151 = vunpack.c.l.b16 %v124
  %v152 = vunpack.c.l.b16 %v125
  %v153 = vpack.c.b16 %v146, %v145
  %v154 = vpack.c.b16 %v148, %v147
  %v155 = vpack.c.b16 %v150, %v149
  %v156 = vpack.c.b16 %v152, %v151
  %v161 = vunpack.c.l.b16 %v126
  %v162 = vunpack.c.l.b16 %v127
  %v163 = vunpack.c.l.b16 %v128
  %v164 = vunpack.c.l.b16 %v129
  %v165 = vpack.c.b16 %v162, %v161
  %v166 = vpack.c.b16 %v164, %v163
  %vm169 = vcmask 261120
  %v171 = vsel %vm169, %v153, 0
  %v174 = vsel %vm169, %v154, 0
  %v177 = vsel %vm169, %v155, 0
  %v180 = vsel %vm169, %v156, 0
  %182 = vmatprep.subr.bf16.mxu0 0
  %183 = vmatpush1.bf16.msra.mxu0 0
  %184 = vmatprep.subr.bf16.mxu0 0
  %185 = vmatpush1.bf16.msra.mxu0 0
  %186 = vmatprep.subr.bf16.mxu0 0
  %187 = vmatpush1.bf16.msra.mxu0 0
  %188 = vmatprep.subr.bf16.mxu0 0
  %189 = vmatpush1.bf16.msra.mxu0 0
  %190 = vmatprep.subr.bf16.mxu0 0
  %191 = vmatpush1.bf16.msra.mxu0 0
  %192 = vmatprep.subr.bf16.mxu0 0
  %193 = vmatpush1.bf16.msra.mxu0 0
  %194 = vmatprep.subr.bf16.mxu0 0
  %195 = vmatpush1.bf16.msra.mxu0 %v166
  %196 = vmatprep.subr.bf16.mxu0 0
  %197 = vmatpush1.bf16.msra.mxu0 %v165
  %198 = vmatprep.subr.bf16.mxu0 0
  %199 = vmatpush2.bf16.msra.mxu0 0
  %200 = vmatprep.subr.bf16.mxu0 0
  %201 = vmatpush2.bf16.msra.mxu0 0
  %202 = vmatprep.subr.bf16.mxu0 0
  %203 = vmatpush2.bf16.msra.mxu0 0
  %204 = vmatprep.subr.bf16.mxu0 0
  %205 = vmatpush2.bf16.msra.mxu0 0
  %206 = vmatprep.subr.bf16.mxu0 0
  %207 = vmatpush2.bf16.msra.mxu0 0
  %208 = vmatprep.subr.bf16.mxu0 0
  %209 = vmatpush2.bf16.msra.mxu0 0
  %210 = vmatprep.subr.bf16.mxu0 0
  %211 = vmatpush2.bf16.msra.mxu0 0
  %212 = vmatprep.subr.bf16.mxu0 0
  %213 = vmatpush2.bf16.msra.mxu0 0
  %214 = vmatprep.mubr.bf16.mxu0 0
  %215 = vmatmul.mubr.bf16.gmra.mxu0 %v171
  %v216 = vpop.f32.mrf.mxu0
  %v217 = vadd.f32 %v135, %v216
  %v218 = vpop.f32.mrf.mxu0
  %v219 = vpop.f32.mrf.mxu0
  %v220 = vadd.f32 %v135, %v219
  %v221 = vpop.f32.mrf.mxu0
  %222 = vmatprep.mubr.bf16.mxu0 0
  %223 = vmatmul.mubr.bf16.gmra.mxu0 %v174
  %v224 = vpop.f32.mrf.mxu0
  %v225 = vadd.f32 %v135, %v224
  %v226 = vpop.f32.mrf.mxu0
  %v227 = vpop.f32.mrf.mxu0
  %v228 = vadd.f32 %v135, %v227
  %v229 = vpop.f32.mrf.mxu0
  %230 = vmatprep.mubr.bf16.mxu0 0
  %231 = vmatmul.mubr.bf16.gmra.mxu0 %v177
  %v232 = vpop.f32.mrf.mxu0
  %v233 = vadd.f32 %v135, %v232
  %v234 = vpop.f32.mrf.mxu0
  %v235 = vpop.f32.mrf.mxu0
  %v236 = vadd.f32 %v135, %v235
  %v237 = vpop.f32.mrf.mxu0
  %238 = vmatprep.mubr.bf16.mxu0 0
  %239 = vmatmul.mubr.bf16.gmra.mxu0 %v180
  %v240 = vpop.f32.mrf.mxu0
  %v241 = vadd.f32 %v135, %v240
  %v242 = vpop.f32.mrf.mxu0
  %v243 = vpop.f32.mrf.mxu0
  %v244 = vadd.f32 %v135, %v243
  %v245 = vpop.f32.mrf.mxu0
  %246 = vdwg.mxu0
  %v247 = vld [vmem:[%s7] sm:$0x1]
  %v249 = vlaneseq
  %v250 = vshrl.u32 %v249, 7
  %v251 = vsub.s32 0, %v250
  %v252 = vrot.slane %v247, %v251
  %v254 = vld [vmem:[%s4] sm:$0xff]
  %v255 = vld [vmem:[%s4 + $0x8] sm:$0xff]
  %v256 = vld [vmem:[%s4 + $0x10] sm:$0xff]
  %v257 = vld [vmem:[%s4 + $0x18] sm:$0xff]
  %v258 = vld [vmem:[%s5] sm:$0xf]
  %v259 = vld [vmem:[%s5 + $0x4] sm:$0xf]
  %v260 = vld [vmem:[%s5 + $0x8] sm:$0xf]
  %v261 = vld [vmem:[%s5 + $0xc] sm:$0xf]
  %v262 = vld [vmem:[#allocation3] sm:$0xff]
  %v263 = vld [vmem:[#allocation4] sm:$0xff]
  %v264 = vld [vmem:[#allocation5] sm:$0xff]
  %v265 = vld [vmem:[#allocation6] sm:$0xff]
  %v266 = vpack.c.bf16 %v263, %v263
  %v271 = vunpack.c.l.b16 %v258
  %v272 = vunpack.c.l.b16 %v259
  %v273 = vunpack.c.l.b16 %v260
  %v274 = vunpack.c.l.b16 %v261
  %v275 = vpack.c.b16 %v272, %v271
  %v276 = vpack.c.b16 %v274, %v273
  %v280 = vsel %vm169, %v266, 0
  %282 = vmatprep.subr.bf16.mxu0 0
  %283 = vmatpush1.bf16.msra.mxu0 0
  %284 = vmatprep.subr.bf16.mxu0 0
  %285 = vmatpush1.bf16.msra.mxu0 0
  %286 = vmatprep.subr.bf16.mxu0 0
  %287 = vmatpush1.bf16.msra.mxu0 0
  %288 = vmatprep.subr.bf16.mxu0 0
  %289 = vmatpush1.bf16.msra.mxu0 0
  %290 = vmatprep.subr.bf16.mxu0 0
  %291 = vmatpush1.bf16.msra.mxu0 0
  %292 = vmatprep.subr.bf16.mxu0 0
  %293 = vmatpush1.bf16.msra.mxu0 0
  %294 = vmatprep.subr.bf16.mxu0 0
  %295 = vmatpush1.bf16.msra.mxu0 %v276
  %296 = vmatprep.subr.bf16.mxu0 0
  %297 = vmatpush1.bf16.msra.mxu0 %v275
  %298 = vmatprep.subr.bf16.mxu0 0
  %299 = vmatpush2.bf16.msra.mxu0 0
  %300 = vmatprep.subr.bf16.mxu0 0
  %301 = vmatpush2.bf16.msra.mxu0 0
  %302 = vmatprep.subr.bf16.mxu0 0
  %303 = vmatpush2.bf16.msra.mxu0 0
  %304 = vmatprep.subr.bf16.mxu0 0
  %305 = vmatpush2.bf16.msra.mxu0 0
  %306 = vmatprep.subr.bf16.mxu0 0
  %307 = vmatpush2.bf16.msra.mxu0 0
  %308 = vmatprep.subr.bf16.mxu0 0
  %309 = vmatpush2.bf16.msra.mxu0 0
  %310 = vmatprep.subr.bf16.mxu0 0
  %311 = vmatpush2.bf16.msra.mxu0 0
  %312 = vmatprep.subr.bf16.mxu0 0
  %313 = vmatpush2.bf16.msra.mxu0 0
  %314 = vmatprep.mubr.bf16.mxu0 0
  %315 = vmatmul.mubr.bf16.gmra.mxu0 %v280
  %v316 = vpop.f32.mrf.mxu0
  %v317 = vadd.f32 0.0, %v316
  %v318 = vpop.f32.mrf.mxu0
  %v319 = vpop.f32.mrf.mxu0
  %v320 = vpop.f32.mrf.mxu0
  %321 = vdwg.mxu0
  %v322 = vadd.f32 %v217, %v265
  %v323 = vxor.u32 %v322, 2147483648
  %v324 = vmul.f32 %v323, 1.442695
  %v325 = vpow.pop %v324
  %v326 = vadd.f32 %v325, 1.0
  %v327 = vrcp.pop %v326
  %v328 = vmul.f32 1.0, %v327
  %v329 = vtanh.pop %v322
  %331 = vrot.lane.b32.xlu0 %v262, 32
  %v332 = vpop.permute.xlu0 %331
  %v334 = vmul.f32 %v328, %v332
  %336 = vrot.lane.b32.xlu0 %v329, 64
  %v337 = vpop.permute.xlu0 %336
  %v339 = vmul.f32 %v328, %v337
  %341 = vrot.lane.b32.xlu0 %v339, 32
  %v342 = vpop.permute.xlu0 %341
  %v344 = vadd.f32 %v334, %v342
  %v345 = vtanh.pop %v344
  %347 = vrot.lane.b32.xlu0 %v345, 64
  %v348 = vpop.permute.xlu0 %347
  %v350 = vmul.f32 %v328, %v348
  %v351 = vpack.c.bf16 %v350, %v350
  %353 = vrot.lane.b32.xlu0 %v351, 32
  %v354 = vpop.permute.xlu0 %353
  %v359 = vunpack.c.l.b16 %v254
  %v360 = vunpack.c.h.b16 %v254
  %v361 = vunpack.c.l.b16 %v255
  %v362 = vunpack.c.h.b16 %v255
  %v363 = vunpack.c.l.b16 %v256
  %v364 = vunpack.c.h.b16 %v256
  %v365 = vunpack.c.l.b16 %v257
  %v366 = vunpack.c.h.b16 %v257
  %v367 = vpack.c.b16 %v361, %v359
  %v368 = vpack.c.b16 %v362, %v360
  %v369 = vpack.c.b16 %v365, %v363
  %v370 = vpack.c.b16 %v366, %v364
  %v376 = vsel %vm169, %v354, 0
  %378 = vmatprep.subr.bf16.mxu0 0
  %379 = vmatpush1.bf16.msra.mxu0 0
  %380 = vmatprep.subr.bf16.mxu0 0
  %381 = vmatpush1.bf16.msra.mxu0 0
  %382 = vmatprep.subr.bf16.mxu0 0
  %383 = vmatpush1.bf16.msra.mxu0 0
  %384 = vmatprep.subr.bf16.mxu0 0
  %385 = vmatpush1.bf16.msra.mxu0 0
  %386 = vmatprep.subr.bf16.mxu0 0
  %387 = vmatpush1.bf16.msra.mxu0 0
  %388 = vmatprep.subr.bf16.mxu0 0
  %389 = vmatpush1.bf16.msra.mxu0 0
  %390 = vmatprep.subr.bf16.mxu0 %v370
  %391 = vmatpush1.bf16.msra.mxu0 %v369
  %392 = vmatprep.subr.bf16.mxu0 %v368
  %393 = vmatpush1.bf16.msra.mxu0 %v367
  %394 = vmatprep.subr.bf16.mxu0 0
  %395 = vmatpush2.bf16.msra.mxu0 0
  %396 = vmatprep.subr.bf16.mxu0 0
  %397 = vmatpush2.bf16.msra.mxu0 0
  %398 = vmatprep.subr.bf16.mxu0 0
  %399 = vmatpush2.bf16.msra.mxu0 0
  %400 = vmatprep.subr.bf16.mxu0 0
  %401 = vmatpush2.bf16.msra.mxu0 0
  %402 = vmatprep.subr.bf16.mxu0 0
  %403 = vmatpush2.bf16.msra.mxu0 0
  %404 = vmatprep.subr.bf16.mxu0 0
  %405 = vmatpush2.bf16.msra.mxu0 0
  %406 = vmatprep.subr.bf16.mxu0 0
  %407 = vmatpush2.bf16.msra.mxu0 0
  %408 = vmatprep.subr.bf16.mxu0 0
  %409 = vmatpush2.bf16.msra.mxu0 0
  %410 = vmatprep.mubr.bf16.mxu0 0
  %411 = vmatmul.mubr.bf16.gmra.mxu0 %v376
  %v412 = vpop.f32.mrf.mxu0
  %v413 = vadd.f32 0.0, %v412
  %v414 = vpop.f32.mrf.mxu0
  %v415 = vadd.f32 0.0, %v414
  %v416 = vpop.f32.mrf.mxu0
  %v417 = vpop.f32.mrf.mxu0
  %418 = vdwg.mxu0
  %v419 = vadd.f32 %v415, %v317
  %v420 = vadd.f32 %v419, %v252
  %v421 = vxor.u32 %v420, 2147483648
  %v422 = vmul.f32 %v421, 1.442695
  %v423 = vpow.pop %v422
  %v424 = vadd.f32 %v423, 1.0
  %v425 = vrcp.pop %v424
  %v426 = vmul.f32 1.0, %v425
  %v427 = vtanh.pop %v420
  %429 = vrot.lane.b32.xlu0 %v264, 32
  %v430 = vpop.permute.xlu0 %429
  %v432 = vmul.f32 %v426, %v430
  %434 = vrot.lane.b32.xlu0 %v427, 64
  %v435 = vpop.permute.xlu0 %434
  %v437 = vmul.f32 %v426, %v435
  %439 = vrot.lane.b32.xlu0 %v437, 32
  %v440 = vpop.permute.xlu0 %439
  %v442 = vadd.f32 %v432, %v440
  %v443 = vtanh.pop %v442
  %445 = vrot.lane.b32.xlu0 %v443, 64
  %v446 = vpop.permute.xlu0 %445
  %v448 = vmul.f32 %v426, %v446
  %v449 = vpack.c.bf16 %v448, %v448
  %451 = vrot.lane.b32.xlu0 %v449, 32
  %v452 = vpop.permute.xlu0 %451
  %v454 = vsel %vm169, %v452, 0
  %456 = vmatprep.subr.bf16.mxu0 0
  %457 = vmatpush1.bf16.msra.mxu0 0
  %458 = vmatprep.subr.bf16.mxu0 0
  %459 = vmatpush1.bf16.msra.mxu0 0
  %460 = vmatprep.subr.bf16.mxu0 0
  %461 = vmatpush1.bf16.msra.mxu0 0
  %462 = vmatprep.subr.bf16.mxu0 0
  %463 = vmatpush1.bf16.msra.mxu0 0
  %464 = vmatprep.subr.bf16.mxu0 0
  %465 = vmatpush1.bf16.msra.mxu0 0
  %466 = vmatprep.subr.bf16.mxu0 0
  %467 = vmatpush1.bf16.msra.mxu0 0
  %468 = vmatprep.subr.bf16.mxu0 0
  %469 = vmatpush1.bf16.msra.mxu0 %v276
  %470 = vmatprep.subr.bf16.mxu0 0
  %471 = vmatpush1.bf16.msra.mxu0 %v275
  %472 = vmatprep.subr.bf16.mxu0 0
  %473 = vmatpush2.bf16.msra.mxu0 0
  %474 = vmatprep.subr.bf16.mxu0 0
  %475 = vmatpush2.bf16.msra.mxu0 0
  %476 = vmatprep.subr.bf16.mxu0 0
  %477 = vmatpush2.bf16.msra.mxu0 0
  %478 = vmatprep.subr.bf16.mxu0 0
  %479 = vmatpush2.bf16.msra.mxu0 0
  %480 = vmatprep.subr.bf16.mxu0 0
  %481 = vmatpush2.bf16.msra.mxu0 0
  %482 = vmatprep.subr.bf16.mxu0 0
  %483 = vmatpush2.bf16.msra.mxu0 0
  %484 = vmatprep.subr.bf16.mxu0 0
  %485 = vmatpush2.bf16.msra.mxu0 0
  %486 = vmatprep.subr.bf16.mxu0 0
  %487 = vmatpush2.bf16.msra.mxu0 0
  %488 = vmatprep.mubr.bf16.mxu0 0
  %489 = vmatmul.mubr.bf16.gmra.mxu0 %v454
  %v490 = vpop.f32.mrf.mxu0
  %v491 = vadd.f32 0.0, %v490
  %v492 = vpop.f32.mrf.mxu0
  %v493 = vpop.f32.mrf.mxu0
  %v494 = vpop.f32.mrf.mxu0
  %495 = vdwg.mxu0
  %v496 = vadd.f32 %v220, %v413
  %v497 = vxor.u32 %v496, 2147483648
  %v498 = vmul.f32 %v497, 1.442695
  %v499 = vpow.pop %v498
  %v500 = vadd.f32 %v499, 1.0
  %v501 = vrcp.pop %v500
  %v502 = vmul.f32 1.0, %v501
  %v503 = vtanh.pop %v496
  %v504 = vmul.f32 %v502, %v344
  %506 = vrot.lane.b32.xlu0 %v503, 64
  %v507 = vpop.permute.xlu0 %506
  %v509 = vmul.f32 %v502, %v507
  %511 = vrot.lane.b32.xlu0 %v509, 32
  %v512 = vpop.permute.xlu0 %511
  %v514 = vadd.f32 %v504, %v512
  %v515 = vtanh.pop %v514
  %517 = vrot.lane.b32.xlu0 %v515, 64
  %v518 = vpop.permute.xlu0 %517
  %v520 = vmul.f32 %v502, %v518
  %v521 = vpack.c.bf16 %v520, %v520
  %523 = vrot.lane.b32.xlu0 %v521, 32
  %v524 = vpop.permute.xlu0 %523
  %v526 = vsel %vm169, %v524, 0
  %528 = vmatprep.subr.bf16.mxu0 0
  %529 = vmatpush1.bf16.msra.mxu0 0
  %530 = vmatprep.subr.bf16.mxu0 0
  %531 = vmatpush1.bf16.msra.mxu0 0
  %532 = vmatprep.subr.bf16.mxu0 0
  %533 = vmatpush1.bf16.msra.mxu0 0
  %534 = vmatprep.subr.bf16.mxu0 0
  %535 = vmatpush1.bf16.msra.mxu0 0
  %536 = vmatprep.subr.bf16.mxu0 0
  %537 = vmatpush1.bf16.msra.mxu0 0
  %538 = vmatprep.subr.bf16.mxu0 0
  %539 = vmatpush1.bf16.msra.mxu0 0
  %540 = vmatprep.subr.bf16.mxu0 %v370
  %541 = vmatpush1.bf16.msra.mxu0 %v369
  %542 = vmatprep.subr.bf16.mxu0 %v368
  %543 = vmatpush1.bf16.msra.mxu0 %v367
  %544 = vmatprep.subr.bf16.mxu0 0
  %545 = vmatpush2.bf16.msra.mxu0 0
  %546 = vmatprep.subr.bf16.mxu0 0
  %547 = vmatpush2.bf16.msra.mxu0 0
  %548 = vmatprep.subr.bf16.mxu0 0
  %549 = vmatpush2.bf16.msra.mxu0 0
  %550 = vmatprep.subr.bf16.mxu0 0
  %551 = vmatpush2.bf16.msra.mxu0 0
  %552 = vmatprep.subr.bf16.mxu0 0
  %553 = vmatpush2.bf16.msra.mxu0 0
  %554 = vmatprep.subr.bf16.mxu0 0
  %555 = vmatpush2.bf16.msra.mxu0 0
  %556 = vmatprep.subr.bf16.mxu0 0
  %557 = vmatpush2.bf16.msra.mxu0 0
  %558 = vmatprep.subr.bf16.mxu0 0
  %559 = vmatpush2.bf16.msra.mxu0 0
  %560 = vmatprep.mubr.bf16.mxu0 0
  %561 = vmatmul.mubr.bf16.gmra.mxu0 %v526
  %v562 = vpop.f32.mrf.mxu0
  %v563 = vadd.f32 0.0, %v562
  %v564 = vpop.f32.mrf.mxu0
  %v565 = vadd.f32 0.0, %v564
  %v566 = vpop.f32.mrf.mxu0
  %v567 = vpop.f32.mrf.mxu0
  %568 = vdwg.mxu0
  %v569 = vadd.f32 %v565, %v491
  %v570 = vadd.f32 %v569, %v252
  %v571 = vxor.u32 %v570, 2147483648
  %v572 = vmul.f32 %v571, 1.442695
  %v573 = vpow.pop %v572
  %v574 = vadd.f32 %v573, 1.0
  %v575 = vrcp.pop %v574
  %v576 = vmul.f32 1.0, %v575
  %v577 = vtanh.pop %v570
  %v578 = vmul.f32 %v576, %v442
  %580 = vrot.lane.b32.xlu0 %v577, 64
  %v581 = vpop.permute.xlu0 %580
  %v583 = vmul.f32 %v576, %v581
  %585 = vrot.lane.b32.xlu0 %v583, 32
  %v586 = vpop.permute.xlu0 %585
  %v588 = vadd.f32 %v578, %v586
  %v589 = vtanh.pop %v588
  %591 = vrot.lane.b32.xlu0 %v589, 64
  %v592 = vpop.permute.xlu0 %591
  %v594 = vmul.f32 %v576, %v592
  %v595 = vpack.c.bf16 %v594, %v594
  %597 = vrot.lane.b32.xlu0 %v595, 32
  %v598 = vpop.permute.xlu0 %597
  %v600 = vsel %vm169, %v598, 0
  %602 = vmatprep.subr.bf16.mxu0 0
  %603 = vmatpush1.bf16.msra.mxu0 0
  %604 = vmatprep.subr.bf16.mxu0 0
  %605 = vmatpush1.bf16.msra.mxu0 0
  %606 = vmatprep.subr.bf16.mxu0 0
  %607 = vmatpush1.bf16.msra.mxu0 0
  %608 = vmatprep.subr.bf16.mxu0 0
  %609 = vmatpush1.bf16.msra.mxu0 0
  %610 = vmatprep.subr.bf16.mxu0 0
  %611 = vmatpush1.bf16.msra.mxu0 0
  %612 = vmatprep.subr.bf16.mxu0 0
  %613 = vmatpush1.bf16.msra.mxu0 0
  %614 = vmatprep.subr.bf16.mxu0 0
  %615 = vmatpush1.bf16.msra.mxu0 %v276
  %616 = vmatprep.subr.bf16.mxu0 0
  %617 = vmatpush1.bf16.msra.mxu0 %v275
  %618 = vmatprep.subr.bf16.mxu0 0
  %619 = vmatpush2.bf16.msra.mxu0 0
  %620 = vmatprep.subr.bf16.mxu0 0
  %621 = vmatpush2.bf16.msra.mxu0 0
  %622 = vmatprep.subr.bf16.mxu0 0
  %623 = vmatpush2.bf16.msra.mxu0 0
  %624 = vmatprep.subr.bf16.mxu0 0
  %625 = vmatpush2.bf16.msra.mxu0 0
  %626 = vmatprep.subr.bf16.mxu0 0
  %627 = vmatpush2.bf16.msra.mxu0 0
  %628 = vmatprep.subr.bf16.mxu0 0
  %629 = vmatpush2.bf16.msra.mxu0 0
  %630 = vmatprep.subr.bf16.mxu0 0
  %631 = vmatpush2.bf16.msra.mxu0 0
  %632 = vmatprep.subr.bf16.mxu0 0
  %633 = vmatpush2.bf16.msra.mxu0 0
  %634 = vmatprep.mubr.bf16.mxu0 0
  %635 = vmatmul.mubr.bf16.gmra.mxu0 %v600
  %v636 = vpop.f32.mrf.mxu0
  %v637 = vadd.f32 0.0, %v636
  %v638 = vpop.f32.mrf.mxu0
  %v639 = vpop.f32.mrf.mxu0
  %v640 = vpop.f32.mrf.mxu0
  %641 = vdwg.mxu0
  %v642 = vadd.f32 %v225, %v563
  %v643 = vxor.u32 %v642, 2147483648
  %v644 = vmul.f32 %v643, 1.442695
  %v645 = vpow.pop %v644
  %v646 = vadd.f32 %v645, 1.0
  %v647 = vrcp.pop %v646
  %v648 = vmul.f32 1.0, %v647
  %v649 = vtanh.pop %v642
  %v650 = vmul.f32 %v648, %v514
  %652 = vrot.lane.b32.xlu0 %v649, 64
  %v653 = vpop.permute.xlu0 %652
  %v655 = vmul.f32 %v648, %v653
  %657 = vrot.lane.b32.xlu0 %v655, 32
  %v658 = vpop.permute.xlu0 %657
  %v660 = vadd.f32 %v650, %v658
  %v661 = vtanh.pop %v660
  %663 = vrot.lane.b32.xlu0 %v661, 64
  %v664 = vpop.permute.xlu0 %663
  %v666 = vmul.f32 %v648, %v664
  %v667 = vpack.c.bf16 %v666, %v666
  %669 = vrot.lane.b32.xlu0 %v667, 32
  %v670 = vpop.permute.xlu0 %669
  %v672 = vsel %vm169, %v670, 0
  %674 = vmatprep.subr.bf16.mxu0 0
  %675 = vmatpush1.bf16.msra.mxu0 0
  %676 = vmatprep.subr.bf16.mxu0 0
  %677 = vmatpush1.bf16.msra.mxu0 0
  %678 = vmatprep.subr.bf16.mxu0 0
  %679 = vmatpush1.bf16.msra.mxu0 0
  %680 = vmatprep.subr.bf16.mxu0 0
  %681 = vmatpush1.bf16.msra.mxu0 0
  %682 = vmatprep.subr.bf16.mxu0 0
  %683 = vmatpush1.bf16.msra.mxu0 0
  %684 = vmatprep.subr.bf16.mxu0 0
  %685 = vmatpush1.bf16.msra.mxu0 0
  %686 = vmatprep.subr.bf16.mxu0 %v370
  %687 = vmatpush1.bf16.msra.mxu0 %v369
  %688 = vmatprep.subr.bf16.mxu0 %v368
  %689 = vmatpush1.bf16.msra.mxu0 %v367
  %690 = vmatprep.subr.bf16.mxu0 0
  %691 = vmatpush2.bf16.msra.mxu0 0
  %692 = vmatprep.subr.bf16.mxu0 0
  %693 = vmatpush2.bf16.msra.mxu0 0
  %694 = vmatprep.subr.bf16.mxu0 0
  %695 = vmatpush2.bf16.msra.mxu0 0
  %696 = vmatprep.subr.bf16.mxu0 0
  %697 = vmatpush2.bf16.msra.mxu0 0
  %698 = vmatprep.subr.bf16.mxu0 0
  %699 = vmatpush2.bf16.msra.mxu0 0
  %700 = vmatprep.subr.bf16.mxu0 0
  %701 = vmatpush2.bf16.msra.mxu0 0
  %702 = vmatprep.subr.bf16.mxu0 0
  %703 = vmatpush2.bf16.msra.mxu0 0
  %704 = vmatprep.subr.bf16.mxu0 0
  %705 = vmatpush2.bf16.msra.mxu0 0
  %706 = vmatprep.mubr.bf16.mxu0 0
  %707 = vmatmul.mubr.bf16.gmra.mxu0 %v672
  %v708 = vpop.f32.mrf.mxu0
  %v709 = vadd.f32 0.0, %v708
  %v710 = vpop.f32.mrf.mxu0
  %v711 = vadd.f32 0.0, %v710
  %v712 = vpop.f32.mrf.mxu0
  %v713 = vpop.f32.mrf.mxu0
  %714 = vdwg.mxu0
  %v715 = vadd.f32 %v711, %v637
  %v716 = vadd.f32 %v715, %v252
  %v717 = vxor.u32 %v716, 2147483648
  %v718 = vmul.f32 %v717, 1.442695
  %v719 = vpow.pop %v718
  %v720 = vadd.f32 %v719, 1.0
  %v721 = vrcp.pop %v720
  %v722 = vmul.f32 1.0, %v721
  %v723 = vtanh.pop %v716
  %v724 = vmul.f32 %v722, %v588
  %726 = vrot.lane.b32.xlu0 %v723, 64
  %v727 = vpop.permute.xlu0 %726
  %v729 = vmul.f32 %v722, %v727
  %731 = vrot.lane.b32.xlu0 %v729, 32
  %v732 = vpop.permute.xlu0 %731
  %v734 = vadd.f32 %v724, %v732
  %v735 = vtanh.pop %v734
  %737 = vrot.lane.b32.xlu0 %v735, 64
  %v738 = vpop.permute.xlu0 %737
  %v740 = vmul.f32 %v722, %v738
  %v741 = vpack.c.bf16 %v740, %v740
  %743 = vrot.lane.b32.xlu0 %v741, 32
  %v744 = vpop.permute.xlu0 %743
  %v746 = vsel %vm169, %v744, 0
  %748 = vmatprep.subr.bf16.mxu0 0
  %749 = vmatpush1.bf16.msra.mxu0 0
  %750 = vmatprep.subr.bf16.mxu0 0
  %751 = vmatpush1.bf16.msra.mxu0 0
  %752 = vmatprep.subr.bf16.mxu0 0
  %753 = vmatpush1.bf16.msra.mxu0 0
  %754 = vmatprep.subr.bf16.mxu0 0
  %755 = vmatpush1.bf16.msra.mxu0 0
  %756 = vmatprep.subr.bf16.mxu0 0
  %757 = vmatpush1.bf16.msra.mxu0 0
  %758 = vmatprep.subr.bf16.mxu0 0
  %759 = vmatpush1.bf16.msra.mxu0 0
  %760 = vmatprep.subr.bf16.mxu0 0
  %761 = vmatpush1.bf16.msra.mxu0 %v276
  %762 = vmatprep.subr.bf16.mxu0 0
  %763 = vmatpush1.bf16.msra.mxu0 %v275
  %764 = vmatprep.subr.bf16.mxu0 0
  %765 = vmatpush2.bf16.msra.mxu0 0
  %766 = vmatprep.subr.bf16.mxu0 0
  %767 = vmatpush2.bf16.msra.mxu0 0
  %768 = vmatprep.subr.bf16.mxu0 0
  %769 = vmatpush2.bf16.msra.mxu0 0
  %770 = vmatprep.subr.bf16.mxu0 0
  %771 = vmatpush2.bf16.msra.mxu0 0
  %772 = vmatprep.subr.bf16.mxu0 0
  %773 = vmatpush2.bf16.msra.mxu0 0
  %774 = vmatprep.subr.bf16.mxu0 0
  %775 = vmatpush2.bf16.msra.mxu0 0
  %776 = vmatprep.subr.bf16.mxu0 0
  %777 = vmatpush2.bf16.msra.mxu0 0
  %778 = vmatprep.subr.bf16.mxu0 0
  %779 = vmatpush2.bf16.msra.mxu0 0
  %780 = vmatprep.mubr.bf16.mxu0 0
  %781 = vmatmul.mubr.bf16.gmra.mxu0 %v746
  %v782 = vpop.f32.mrf.mxu0
  %v783 = vadd.f32 0.0, %v782
  %v784 = vpop.f32.mrf.mxu0
  %v785 = vpop.f32.mrf.mxu0
  %v786 = vpop.f32.mrf.mxu0
  %787 = vdwg.mxu0
  %v788 = vadd.f32 %v228, %v709
  %v789 = vxor.u32 %v788, 2147483648
  %v790 = vmul.f32 %v789, 1.442695
  %v791 = vpow.pop %v790
  %v792 = vadd.f32 %v791, 1.0
  %v793 = vrcp.pop %v792
  %v794 = vmul.f32 1.0, %v793
  %v795 = vtanh.pop %v788
  %v796 = vmul.f32 %v794, %v660
  %798 = vrot.lane.b32.xlu0 %v795, 64
  %v799 = vpop.permute.xlu0 %798
  %v801 = vmul.f32 %v794, %v799
  %803 = vrot.lane.b32.xlu0 %v801, 32
  %v804 = vpop.permute.xlu0 %803
  %v806 = vadd.f32 %v796, %v804
  %v807 = vtanh.pop %v806
  %809 = vrot.lane.b32.xlu0 %v807, 64
  %v810 = vpop.permute.xlu0 %809
  %v812 = vmul.f32 %v794, %v810
  %v813 = vpack.c.bf16 %v812, %v812
  %815 = vrot.lane.b32.xlu0 %v813, 32
  %v816 = vpop.permute.xlu0 %815
  %v818 = vsel %vm169, %v816, 0
  %820 = vmatprep.subr.bf16.mxu0 0
  %821 = vmatpush1.bf16.msra.mxu0 0
  %822 = vmatprep.subr.bf16.mxu0 0
  %823 = vmatpush1.bf16.msra.mxu0 0
  %824 = vmatprep.subr.bf16.mxu0 0
  %825 = vmatpush1.bf16.msra.mxu0 0
  %826 = vmatprep.subr.bf16.mxu0 0
  %827 = vmatpush1.bf16.msra.mxu0 0
  %828 = vmatprep.subr.bf16.mxu0 0
  %829 = vmatpush1.bf16.msra.mxu0 0
  %830 = vmatprep.subr.bf16.mxu0 0
  %831 = vmatpush1.bf16.msra.mxu0 0
  %832 = vmatprep.subr.bf16.mxu0 %v370
  %833 = vmatpush1.bf16.msra.mxu0 %v369
  %834 = vmatprep.subr.bf16.mxu0 %v368
  %835 = vmatpush1.bf16.msra.mxu0 %v367
  %836 = vmatprep.subr.bf16.mxu0 0
  %837 = vmatpush2.bf16.msra.mxu0 0
  %838 = vmatprep.subr.bf16.mxu0 0
  %839 = vmatpush2.bf16.msra.mxu0 0
  %840 = vmatprep.subr.bf16.mxu0 0
  %841 = vmatpush2.bf16.msra.mxu0 0
  %842 = vmatprep.subr.bf16.mxu0 0
  %843 = vmatpush2.bf16.msra.mxu0 0
  %844 = vmatprep.subr.bf16.mxu0 0
  %845 = vmatpush2.bf16.msra.mxu0 0
  %846 = vmatprep.subr.bf16.mxu0 0
  %847 = vmatpush2.bf16.msra.mxu0 0
  %848 = vmatprep.subr.bf16.mxu0 0
  %849 = vmatpush2.bf16.msra.mxu0 0
  %850 = vmatprep.subr.bf16.mxu0 0
  %851 = vmatpush2.bf16.msra.mxu0 0
  %852 = vmatprep.mubr.bf16.mxu0 0
  %853 = vmatmul.mubr.bf16.gmra.mxu0 %v818
  %v854 = vpop.f32.mrf.mxu0
  %v855 = vadd.f32 0.0, %v854
  %v856 = vpop.f32.mrf.mxu0
  %v857 = vadd.f32 0.0, %v856
  %v858 = vpop.f32.mrf.mxu0
  %v859 = vpop.f32.mrf.mxu0
  %860 = vdwg.mxu0
  %v861 = vadd.f32 %v857, %v783
  %v862 = vadd.f32 %v861, %v252
  %v863 = vxor.u32 %v862, 2147483648
  %v864 = vmul.f32 %v863, 1.442695
  %v865 = vpow.pop %v864
  %v866 = vadd.f32 %v865, 1.0
  %v867 = vrcp.pop %v866
  %v868 = vmul.f32 1.0, %v867
  %v869 = vtanh.pop %v862
  %v870 = vmul.f32 %v868, %v734
  %872 = vrot.lane.b32.xlu0 %v869, 64
  %v873 = vpop.permute.xlu0 %872
  %v875 = vmul.f32 %v868, %v873
  %877 = vrot.lane.b32.xlu0 %v875, 32
  %v878 = vpop.permute.xlu0 %877
  %v880 = vadd.f32 %v870, %v878
  %v881 = vtanh.pop %v880
  %883 = vrot.lane.b32.xlu0 %v881, 64
  %v884 = vpop.permute.xlu0 %883
  %v886 = vmul.f32 %v868, %v884
  %v887 = vpack.c.bf16 %v886, %v886
  %889 = vrot.lane.b32.xlu0 %v887, 32
  %v890 = vpop.permute.xlu0 %889
  %v892 = vsel %vm169, %v890, 0
  %894 = vmatprep.subr.bf16.mxu0 0
  %895 = vmatpush1.bf16.msra.mxu0 0
  %896 = vmatprep.subr.bf16.mxu0 0
  %897 = vmatpush1.bf16.msra.mxu0 0
  %898 = vmatprep.subr.bf16.mxu0 0
  %899 = vmatpush1.bf16.msra.mxu0 0
  %900 = vmatprep.subr.bf16.mxu0 0
  %901 = vmatpush1.bf16.msra.mxu0 0
  %902 = vmatprep.subr.bf16.mxu0 0
  %903 = vmatpush1.bf16.msra.mxu0 0
  %904 = vmatprep.subr.bf16.mxu0 0
  %905 = vmatpush1.bf16.msra.mxu0 0
  %906 = vmatprep.subr.bf16.mxu0 0
  %907 = vmatpush1.bf16.msra.mxu0 %v276
  %908 = vmatprep.subr.bf16.mxu0 0
  %909 = vmatpush1.bf16.msra.mxu0 %v275
  %910 = vmatprep.subr.bf16.mxu0 0
  %911 = vmatpush2.bf16.msra.mxu0 0
  %912 = vmatprep.subr.bf16.mxu0 0
  %913 = vmatpush2.bf16.msra.mxu0 0
  %914 = vmatprep.subr.bf16.mxu0 0
  %915 = vmatpush2.bf16.msra.mxu0 0
  %916 = vmatprep.subr.bf16.mxu0 0
  %917 = vmatpush2.bf16.msra.mxu0 0
  %918 = vmatprep.subr.bf16.mxu0 0
  %919 = vmatpush2.bf16.msra.mxu0 0
  %920 = vmatprep.subr.bf16.mxu0 0
  %921 = vmatpush2.bf16.msra.mxu0 0
  %922 = vmatprep.subr.bf16.mxu0 0
  %923 = vmatpush2.bf16.msra.mxu0 0
  %924 = vmatprep.subr.bf16.mxu0 0
  %925 = vmatpush2.bf16.msra.mxu0 0
  %926 = vmatprep.mubr.bf16.mxu0 0
  %927 = vmatmul.mubr.bf16.gmra.mxu0 %v892
  %v928 = vpop.f32.mrf.mxu0
  %v929 = vadd.f32 0.0, %v928
  %v930 = vpop.f32.mrf.mxu0
  %v931 = vpop.f32.mrf.mxu0
  %v932 = vpop.f32.mrf.mxu0
  %933 = vdwg.mxu0
  %v934 = vadd.f32 %v233, %v855
  %v935 = vxor.u32 %v934, 2147483648
  %v936 = vmul.f32 %v935, 1.442695
  %v937 = vpow.pop %v936
  %v938 = vadd.f32 %v937, 1.0
  %v939 = vrcp.pop %v938
  %v940 = vmul.f32 1.0, %v939
  %v941 = vtanh.pop %v934
  %v942 = vmul.f32 %v940, %v806
  %944 = vrot.lane.b32.xlu0 %v941, 64
  %v945 = vpop.permute.xlu0 %944
  %v947 = vmul.f32 %v940, %v945
  %949 = vrot.lane.b32.xlu0 %v947, 32
  %v950 = vpop.permute.xlu0 %949
  %v952 = vadd.f32 %v942, %v950
  %v953 = vtanh.pop %v952
  %955 = vrot.lane.b32.xlu0 %v953, 64
  %v956 = vpop.permute.xlu0 %955
  %v958 = vmul.f32 %v940, %v956
  %v959 = vpack.c.bf16 %v958, %v958
  %961 = vrot.lane.b32.xlu0 %v959, 32
  %v962 = vpop.permute.xlu0 %961
  %v964 = vsel %vm169, %v962, 0
  %966 = vmatprep.subr.bf16.mxu0 0
  %967 = vmatpush1.bf16.msra.mxu0 0
  %968 = vmatprep.subr.bf16.mxu0 0
  %969 = vmatpush1.bf16.msra.mxu0 0
  %970 = vmatprep.subr.bf16.mxu0 0
  %971 = vmatpush1.bf16.msra.mxu0 0
  %972 = vmatprep.subr.bf16.mxu0 0
  %973 = vmatpush1.bf16.msra.mxu0 0
  %974 = vmatprep.subr.bf16.mxu0 0
  %975 = vmatpush1.bf16.msra.mxu0 0
  %976 = vmatprep.subr.bf16.mxu0 0
  %977 = vmatpush1.bf16.msra.mxu0 0
  %978 = vmatprep.subr.bf16.mxu0 %v370
  %979 = vmatpush1.bf16.msra.mxu0 %v369
  %980 = vmatprep.subr.bf16.mxu0 %v368
  %981 = vmatpush1.bf16.msra.mxu0 %v367
  %982 = vmatprep.subr.bf16.mxu0 0
  %983 = vmatpush2.bf16.msra.mxu0 0
  %984 = vmatprep.subr.bf16.mxu0 0
  %985 = vmatpush2.bf16.msra.mxu0 0
  %986 = vmatprep.subr.bf16.mxu0 0
  %987 = vmatpush2.bf16.msra.mxu0 0
  %988 = vmatprep.subr.bf16.mxu0 0
  %989 = vmatpush2.bf16.msra.mxu0 0
  %990 = vmatprep.subr.bf16.mxu0 0
  %991 = vmatpush2.bf16.msra.mxu0 0
  %992 = vmatprep.subr.bf16.mxu0 0
  %993 = vmatpush2.bf16.msra.mxu0 0
  %994 = vmatprep.subr.bf16.mxu0 0
  %995 = vmatpush2.bf16.msra.mxu0 0
  %996 = vmatprep.subr.bf16.mxu0 0
  %997 = vmatpush2.bf16.msra.mxu0 0
  %998 = vmatprep.mubr.bf16.mxu0 0
  %999 = vmatmul.mubr.bf16.gmra.mxu0 %v964
  %v1000 = vpop.f32.mrf.mxu0
  %v1001 = vadd.f32 0.0, %v1000
  %v1002 = vpop.f32.mrf.mxu0
  %v1003 = vadd.f32 0.0, %v1002
  %v1004 = vpop.f32.mrf.mxu0
  %v1005 = vpop.f32.mrf.mxu0
  %1006 = vdwg.mxu0
  %v1007 = vadd.f32 %v1003, %v929
  %v1008 = vadd.f32 %v1007, %v252
  %v1009 = vxor.u32 %v1008, 2147483648
  %v1010 = vmul.f32 %v1009, 1.442695
  %v1011 = vpow.pop %v1010
  %v1012 = vadd.f32 %v1011, 1.0
  %v1013 = vrcp.pop %v1012
  %v1014 = vmul.f32 1.0, %v1013
  %v1015 = vtanh.pop %v1008
  %v1016 = vmul.f32 %v1014, %v880
  %1018 = vrot.lane.b32.xlu0 %v1015, 64
  %v1019 = vpop.permute.xlu0 %1018
  %v1021 = vmul.f32 %v1014, %v1019
  %1023 = vrot.lane.b32.xlu0 %v1021, 32
  %v1024 = vpop.permute.xlu0 %1023
  %v1026 = vadd.f32 %v1016, %v1024
  %v1027 = vtanh.pop %v1026
  %1029 = vrot.lane.b32.xlu0 %v1027, 64
  %v1030 = vpop.permute.xlu0 %1029
  %v1032 = vmul.f32 %v1014, %v1030
  %v1033 = vpack.c.bf16 %v1032, %v1032
  %1035 = vrot.lane.b32.xlu0 %v1033, 32
  %v1036 = vpop.permute.xlu0 %1035
  %v1038 = vsel %vm169, %v1036, 0
  %1040 = vmatprep.subr.bf16.mxu0 0
  %1041 = vmatpush1.bf16.msra.mxu0 0
  %1042 = vmatprep.subr.bf16.mxu0 0
  %1043 = vmatpush1.bf16.msra.mxu0 0
  %1044 = vmatprep.subr.bf16.mxu0 0
  %1045 = vmatpush1.bf16.msra.mxu0 0
  %1046 = vmatprep.subr.bf16.mxu0 0
  %1047 = vmatpush1.bf16.msra.mxu0 0
  %1048 = vmatprep.subr.bf16.mxu0 0
  %1049 = vmatpush1.bf16.msra.mxu0 0
  %1050 = vmatprep.subr.bf16.mxu0 0
  %1051 = vmatpush1.bf16.msra.mxu0 0
  %1052 = vmatprep.subr.bf16.mxu0 0
  %1053 = vmatpush1.bf16.msra.mxu0 %v276
  %1054 = vmatprep.subr.bf16.mxu0 0
  %1055 = vmatpush1.bf16.msra.mxu0 %v275
  %1056 = vmatprep.subr.bf16.mxu0 0
  %1057 = vmatpush2.bf16.msra.mxu0 0
  %1058 = vmatprep.subr.bf16.mxu0 0
  %1059 = vmatpush2.bf16.msra.mxu0 0
  %1060 = vmatprep.subr.bf16.mxu0 0
  %1061 = vmatpush2.bf16.msra.mxu0 0
  %1062 = vmatprep.subr.bf16.mxu0 0
  %1063 = vmatpush2.bf16.msra.mxu0 0
  %1064 = vmatprep.subr.bf16.mxu0 0
  %1065 = vmatpush2.bf16.msra.mxu0 0
  %1066 = vmatprep.subr.bf16.mxu0 0
  %1067 = vmatpush2.bf16.msra.mxu0 0
  %1068 = vmatprep.subr.bf16.mxu0 0
  %1069 = vmatpush2.bf16.msra.mxu0 0
  %1070 = vmatprep.subr.bf16.mxu0 0
  %1071 = vmatpush2.bf16.msra.mxu0 0
  %1072 = vmatprep.mubr.bf16.mxu0 0
  %1073 = vmatmul.mubr.bf16.gmra.mxu0 %v1038
  %v1074 = vpop.f32.mrf.mxu0
  %v1075 = vadd.f32 0.0, %v1074
  %v1076 = vpop.f32.mrf.mxu0
  %v1077 = vpop.f32.mrf.mxu0
  %v1078 = vpop.f32.mrf.mxu0
  %1079 = vdwg.mxu0
  %v1080 = vadd.f32 %v236, %v1001
  %v1081 = vxor.u32 %v1080, 2147483648
  %v1082 = vmul.f32 %v1081, 1.442695
  %v1083 = vpow.pop %v1082
  %v1084 = vadd.f32 %v1083, 1.0
  %v1085 = vrcp.pop %v1084
  %v1086 = vmul.f32 1.0, %v1085
  %v1087 = vtanh.pop %v1080
  %v1088 = vmul.f32 %v1086, %v952
  %1090 = vrot.lane.b32.xlu0 %v1087, 64
  %v1091 = vpop.permute.xlu0 %1090
  %v1093 = vmul.f32 %v1086, %v1091
  %1095 = vrot.lane.b32.xlu0 %v1093, 32
  %v1096 = vpop.permute.xlu0 %1095
  %v1098 = vadd.f32 %v1088, %v1096
  %v1099 = vtanh.pop %v1098
  %1101 = vrot.lane.b32.xlu0 %v1099, 64
  %v1102 = vpop.permute.xlu0 %1101
  %v1104 = vmul.f32 %v1086, %v1102
  %v1105 = vpack.c.bf16 %v1104, %v1104
  %1107 = vrot.lane.b32.xlu0 %v1105, 32
  %v1108 = vpop.permute.xlu0 %1107
  %v1110 = vsel %vm169, %v1108, 0
  %1112 = vmatprep.subr.bf16.mxu0 0
  %1113 = vmatpush1.bf16.msra.mxu0 0
  %1114 = vmatprep.subr.bf16.mxu0 0
  %1115 = vmatpush1.bf16.msra.mxu0 0
  %1116 = vmatprep.subr.bf16.mxu0 0
  %1117 = vmatpush1.bf16.msra.mxu0 0
  %1118 = vmatprep.subr.bf16.mxu0 0
  %1119 = vmatpush1.bf16.msra.mxu0 0
  %1120 = vmatprep.subr.bf16.mxu0 0
  %1121 = vmatpush1.bf16.msra.mxu0 0
  %1122 = vmatprep.subr.bf16.mxu0 0
  %1123 = vmatpush1.bf16.msra.mxu0 0
  %1124 = vmatprep.subr.bf16.mxu0 %v370
  %1125 = vmatpush1.bf16.msra.mxu0 %v369
  %1126 = vmatprep.subr.bf16.mxu0 %v368
  %1127 = vmatpush1.bf16.msra.mxu0 %v367
  %1128 = vmatprep.subr.bf16.mxu0 0
  %1129 = vmatpush2.bf16.msra.mxu0 0
  %1130 = vmatprep.subr.bf16.mxu0 0
  %1131 = vmatpush2.bf16.msra.mxu0 0
  %1132 = vmatprep.subr.bf16.mxu0 0
  %1133 = vmatpush2.bf16.msra.mxu0 0
  %1134 = vmatprep.subr.bf16.mxu0 0
  %1135 = vmatpush2.bf16.msra.mxu0 0
  %1136 = vmatprep.subr.bf16.mxu0 0
  %1137 = vmatpush2.bf16.msra.mxu0 0
  %1138 = vmatprep.subr.bf16.mxu0 0
  %1139 = vmatpush2.bf16.msra.mxu0 0
  %1140 = vmatprep.subr.bf16.mxu0 0
  %1141 = vmatpush2.bf16.msra.mxu0 0
  %1142 = vmatprep.subr.bf16.mxu0 0
  %1143 = vmatpush2.bf16.msra.mxu0 0
  %1144 = vmatprep.mubr.bf16.mxu0 0
  %1145 = vmatmul.mubr.bf16.gmra.mxu0 %v1110
  %v1146 = vpop.f32.mrf.mxu0
  %v1147 = vadd.f32 0.0, %v1146
  %v1148 = vpop.f32.mrf.mxu0
  %v1149 = vadd.f32 0.0, %v1148
  %v1150 = vpop.f32.mrf.mxu0
  %v1151 = vpop.f32.mrf.mxu0
  %1152 = vdwg.mxu0
  %v1153 = vadd.f32 %v1149, %v1075
  %v1154 = vadd.f32 %v1153, %v252
  %v1155 = vxor.u32 %v1154, 2147483648
  %v1156 = vmul.f32 %v1155, 1.442695
  %v1157 = vpow.pop %v1156
  %v1158 = vadd.f32 %v1157, 1.0
  %v1159 = vrcp.pop %v1158
  %v1160 = vmul.f32 1.0, %v1159
  %v1161 = vtanh.pop %v1154
  %v1162 = vmul.f32 %v1160, %v1026
  %1164 = vrot.lane.b32.xlu0 %v1161, 64
  %v1165 = vpop.permute.xlu0 %1164
  %v1167 = vmul.f32 %v1160, %v1165
  %1169 = vrot.lane.b32.xlu0 %v1167, 32
  %v1170 = vpop.permute.xlu0 %1169
  %v1172 = vadd.f32 %v1162, %v1170
  %v1173 = vtanh.pop %v1172
  %1175 = vrot.lane.b32.xlu0 %v1173, 64
  %v1176 = vpop.permute.xlu0 %1175
  %v1178 = vmul.f32 %v1160, %v1176
  %v1179 = vpack.c.bf16 %v1178, %v1178
  %1181 = vrot.lane.b32.xlu0 %v1179, 32
  %v1182 = vpop.permute.xlu0 %1181
  %v1184 = vsel %vm169, %v1182, 0
  %1186 = vmatprep.subr.bf16.mxu0 0
  %1187 = vmatpush1.bf16.msra.mxu0 0
  %1188 = vmatprep.subr.bf16.mxu0 0
  %1189 = vmatpush1.bf16.msra.mxu0 0
  %1190 = vmatprep.subr.bf16.mxu0 0
  %1191 = vmatpush1.bf16.msra.mxu0 0
  %1192 = vmatprep.subr.bf16.mxu0 0
  %1193 = vmatpush1.bf16.msra.mxu0 0
  %1194 = vmatprep.subr.bf16.mxu0 0
  %1195 = vmatpush1.bf16.msra.mxu0 0
  %1196 = vmatprep.subr.bf16.mxu0 0
  %1197 = vmatpush1.bf16.msra.mxu0 0
  %1198 = vmatprep.subr.bf16.mxu0 0
  %1199 = vmatpush1.bf16.msra.mxu0 %v276
  %1200 = vmatprep.subr.bf16.mxu0 0
  %1201 = vmatpush1.bf16.msra.mxu0 %v275
  %1202 = vmatprep.subr.bf16.mxu0 0
  %1203 = vmatpush2.bf16.msra.mxu0 0
  %1204 = vmatprep.subr.bf16.mxu0 0
  %1205 = vmatpush2.bf16.msra.mxu0 0
  %1206 = vmatprep.subr.bf16.mxu0 0
  %1207 = vmatpush2.bf16.msra.mxu0 0
  %1208 = vmatprep.subr.bf16.mxu0 0
  %1209 = vmatpush2.bf16.msra.mxu0 0
  %1210 = vmatprep.subr.bf16.mxu0 0
  %1211 = vmatpush2.bf16.msra.mxu0 0
  %1212 = vmatprep.subr.bf16.mxu0 0
  %1213 = vmatpush2.bf16.msra.mxu0 0
  %1214 = vmatprep.subr.bf16.mxu0 0
  %1215 = vmatpush2.bf16.msra.mxu0 0
  %1216 = vmatprep.subr.bf16.mxu0 0
  %1217 = vmatpush2.bf16.msra.mxu0 0
  %1218 = vmatprep.mubr.bf16.mxu0 0
  %1219 = vmatmul.mubr.bf16.gmra.mxu0 %v1184
  %v1220 = vpop.f32.mrf.mxu0
  %v1221 = vadd.f32 0.0, %v1220
  %v1222 = vpop.f32.mrf.mxu0
  %v1223 = vpop.f32.mrf.mxu0
  %v1224 = vpop.f32.mrf.mxu0
  %1225 = vdwg.mxu0
  %v1226 = vadd.f32 %v241, %v1147
  %v1227 = vxor.u32 %v1226, 2147483648
  %v1228 = vmul.f32 %v1227, 1.442695
  %v1229 = vpow.pop %v1228
  %v1230 = vadd.f32 %v1229, 1.0
  %v1231 = vrcp.pop %v1230
  %v1232 = vmul.f32 1.0, %v1231
  %v1233 = vtanh.pop %v1226
  %v1234 = vmul.f32 %v1232, %v1098
  %1236 = vrot.lane.b32.xlu0 %v1233, 64
  %v1237 = vpop.permute.xlu0 %1236
  %v1239 = vmul.f32 %v1232, %v1237
  %1241 = vrot.lane.b32.xlu0 %v1239, 32
  %v1242 = vpop.permute.xlu0 %1241
  %v1244 = vadd.f32 %v1234, %v1242
  %v1245 = vtanh.pop %v1244
  %1247 = vrot.lane.b32.xlu0 %v1245, 64
  %v1248 = vpop.permute.xlu0 %1247
  %v1250 = vmul.f32 %v1232, %v1248
  %v1251 = vpack.c.bf16 %v1250, %v1250
  %1253 = vrot.lane.b32.xlu0 %v1251, 32
  %v1254 = vpop.permute.xlu0 %1253
  %v1256 = vsel %vm169, %v1254, 0
  %1258 = vmatprep.subr.bf16.mxu0 0
  %1259 = vmatpush1.bf16.msra.mxu0 0
  %1260 = vmatprep.subr.bf16.mxu0 0
  %1261 = vmatpush1.bf16.msra.mxu0 0
  %1262 = vmatprep.subr.bf16.mxu0 0
  %1263 = vmatpush1.bf16.msra.mxu0 0
  %1264 = vmatprep.subr.bf16.mxu0 0
  %1265 = vmatpush1.bf16.msra.mxu0 0
  %1266 = vmatprep.subr.bf16.mxu0 0
  %1267 = vmatpush1.bf16.msra.mxu0 0
  %1268 = vmatprep.subr.bf16.mxu0 0
  %1269 = vmatpush1.bf16.msra.mxu0 0
  %1270 = vmatprep.subr.bf16.mxu0 %v370
  %1271 = vmatpush1.bf16.msra.mxu0 %v369
  %1272 = vmatprep.subr.bf16.mxu0 %v368
  %1273 = vmatpush1.bf16.msra.mxu0 %v367
  %1274 = vmatprep.subr.bf16.mxu0 0
  %1275 = vmatpush2.bf16.msra.mxu0 0
  %1276 = vmatprep.subr.bf16.mxu0 0
  %1277 = vmatpush2.bf16.msra.mxu0 0
  %1278 = vmatprep.subr.bf16.mxu0 0
  %1279 = vmatpush2.bf16.msra.mxu0 0
  %1280 = vmatprep.subr.bf16.mxu0 0
  %1281 = vmatpush2.bf16.msra.mxu0 0
  %1282 = vmatprep.subr.bf16.mxu0 0
  %1283 = vmatpush2.bf16.msra.mxu0 0
  %1284 = vmatprep.subr.bf16.mxu0 0
  %1285 = vmatpush2.bf16.msra.mxu0 0
  %1286 = vmatprep.subr.bf16.mxu0 0
  %1287 = vmatpush2.bf16.msra.mxu0 0
  %1288 = vmatprep.subr.bf16.mxu0 0
  %1289 = vmatpush2.bf16.msra.mxu0 0
  %1290 = vmatprep.mubr.bf16.mxu0 0
  %1291 = vmatmul.mubr.bf16.gmra.mxu0 %v1256
  %v1292 = vpop.f32.mrf.mxu0
  %v1293 = vadd.f32 0.0, %v1292
  %v1294 = vpop.f32.mrf.mxu0
  %v1295 = vadd.f32 0.0, %v1294
  %v1296 = vpop.f32.mrf.mxu0
  %v1297 = vpop.f32.mrf.mxu0
  %1298 = vdwg.mxu0
  %v1299 = vadd.f32 %v1295, %v1221
  %v1300 = vadd.f32 %v1299, %v252
  %v1301 = vxor.u32 %v1300, 2147483648
  %v1302 = vmul.f32 %v1301, 1.442695
  %v1303 = vpow.pop %v1302
  %v1304 = vadd.f32 %v1303, 1.0
  %v1305 = vrcp.pop %v1304
  %v1306 = vmul.f32 1.0, %v1305
  %v1307 = vtanh.pop %v1300
  %v1308 = vmul.f32 %v1306, %v1172
  %1310 = vrot.lane.b32.xlu0 %v1307, 64
  %v1311 = vpop.permute.xlu0 %1310
  %v1313 = vmul.f32 %v1306, %v1311
  %1315 = vrot.lane.b32.xlu0 %v1313, 32
  %v1316 = vpop.permute.xlu0 %1315
  %v1318 = vadd.f32 %v1308, %v1316
  %v1319 = vtanh.pop %v1318
  %1321 = vrot.lane.b32.xlu0 %v1319, 64
  %v1322 = vpop.permute.xlu0 %1321
  %v1324 = vmul.f32 %v1306, %v1322
  %v1325 = vpack.c.bf16 %v1324, %v1324
  %1327 = vrot.lane.b32.xlu0 %v1325, 32
  %v1328 = vpop.permute.xlu0 %1327
  %v1330 = vsel %vm169, %v1328, 0
  %1332 = vmatprep.subr.bf16.mxu0 0
  %1333 = vmatpush1.bf16.msra.mxu0 0
  %1334 = vmatprep.subr.bf16.mxu0 0
  %1335 = vmatpush1.bf16.msra.mxu0 0
  %1336 = vmatprep.subr.bf16.mxu0 0
  %1337 = vmatpush1.bf16.msra.mxu0 0
  %1338 = vmatprep.subr.bf16.mxu0 0
  %1339 = vmatpush1.bf16.msra.mxu0 0
  %1340 = vmatprep.subr.bf16.mxu0 0
  %1341 = vmatpush1.bf16.msra.mxu0 0
  %1342 = vmatprep.subr.bf16.mxu0 0
  %1343 = vmatpush1.bf16.msra.mxu0 0
  %1344 = vmatprep.subr.bf16.mxu0 0
  %1345 = vmatpush1.bf16.msra.mxu0 %v276
  %1346 = vmatprep.subr.bf16.mxu0 0
  %1347 = vmatpush1.bf16.msra.mxu0 %v275
  %1348 = vmatprep.subr.bf16.mxu0 0
  %1349 = vmatpush2.bf16.msra.mxu0 0
  %1350 = vmatprep.subr.bf16.mxu0 0
  %1351 = vmatpush2.bf16.msra.mxu0 0
  %1352 = vmatprep.subr.bf16.mxu0 0
  %1353 = vmatpush2.bf16.msra.mxu0 0
  %1354 = vmatprep.subr.bf16.mxu0 0
  %1355 = vmatpush2.bf16.msra.mxu0 0
  %1356 = vmatprep.subr.bf16.mxu0 0
  %1357 = vmatpush2.bf16.msra.mxu0 0
  %1358 = vmatprep.subr.bf16.mxu0 0
  %1359 = vmatpush2.bf16.msra.mxu0 0
  %1360 = vmatprep.subr.bf16.mxu0 0
  %1361 = vmatpush2.bf16.msra.mxu0 0
  %1362 = vmatprep.subr.bf16.mxu0 0
  %1363 = vmatpush2.bf16.msra.mxu0 0
  %1364 = vmatprep.mubr.bf16.mxu0 0
  %1365 = vmatmul.mubr.bf16.gmra.mxu0 %v1330
  %v1366 = vpop.f32.mrf.mxu0
  %v1367 = vadd.f32 0.0, %v1366
  %v1368 = vpop.f32.mrf.mxu0
  %v1369 = vpop.f32.mrf.mxu0
  %v1370 = vpop.f32.mrf.mxu0
  %1371 = vdwg.mxu0
  %v1372 = vadd.f32 %v244, %v1293
  %v1373 = vxor.u32 %v1372, 2147483648
  %v1374 = vmul.f32 %v1373, 1.442695
  %v1375 = vpow.pop %v1374
  %v1376 = vadd.f32 %v1375, 1.0
  %v1377 = vrcp.pop %v1376
  %v1378 = vmul.f32 1.0, %v1377
  %v1379 = vtanh.pop %v1372
  %v1380 = vmul.f32 %v1378, %v1244
  %1382 = vrot.lane.b32.xlu0 %v1379, 64
  %v1383 = vpop.permute.xlu0 %1382
  %v1385 = vmul.f32 %v1378, %v1383
  %1387 = vrot.lane.b32.xlu0 %v1385, 32
  %v1388 = vpop.permute.xlu0 %1387
  %v1390 = vadd.f32 %v1380, %v1388
  %v1391 = vtanh.pop %v1390
  %1393 = vrot.lane.b32.xlu0 %v1391, 64
  %v1394 = vpop.permute.xlu0 %1393
  %v1396 = vmul.f32 %v1378, %v1394
  %v1397 = vpack.c.bf16 %v1396, %v1396
  %1399 = vrot.lane.b32.xlu0 %v1397, 32
  %v1400 = vpop.permute.xlu0 %1399
  %v1402 = vsel %vm169, %v1400, 0
  %1404 = vmatprep.subr.bf16.mxu0 0
  %1405 = vmatpush1.bf16.msra.mxu0 0
  %1406 = vmatprep.subr.bf16.mxu0 0
  %1407 = vmatpush1.bf16.msra.mxu0 0
  %1408 = vmatprep.subr.bf16.mxu0 0
  %1409 = vmatpush1.bf16.msra.mxu0 0
  %1410 = vmatprep.subr.bf16.mxu0 0
  %1411 = vmatpush1.bf16.msra.mxu0 0
  %1412 = vmatprep.subr.bf16.mxu0 0
  %1413 = vmatpush1.bf16.msra.mxu0 0
  %1414 = vmatprep.subr.bf16.mxu0 0
  %1415 = vmatpush1.bf16.msra.mxu0 0
  %1416 = vmatprep.subr.bf16.mxu0 %v370
  %1417 = vmatpush1.bf16.msra.mxu0 %v369
  %1418 = vmatprep.subr.bf16.mxu0 %v368
  %1419 = vmatpush1.bf16.msra.mxu0 %v367
  %1420 = vmatprep.subr.bf16.mxu0 0
  %1421 = vmatpush2.bf16.msra.mxu0 0
  %1422 = vmatprep.subr.bf16.mxu0 0
  %1423 = vmatpush2.bf16.msra.mxu0 0
  %1424 = vmatprep.subr.bf16.mxu0 0
  %1425 = vmatpush2.bf16.msra.mxu0 0
  %1426 = vmatprep.subr.bf16.mxu0 0
  %1427 = vmatpush2.bf16.msra.mxu0 0
  %1428 = vmatprep.subr.bf16.mxu0 0
  %1429 = vmatpush2.bf16.msra.mxu0 0
  %1430 = vmatprep.subr.bf16.mxu0 0
  %1431 = vmatpush2.bf16.msra.mxu0 0
  %1432 = vmatprep.subr.bf16.mxu0 0
  %1433 = vmatpush2.bf16.msra.mxu0 0
  %1434 = vmatprep.subr.bf16.mxu0 0
  %1435 = vmatpush2.bf16.msra.mxu0 0
  %1436 = vmatprep.mubr.bf16.mxu0 0
  %1437 = vmatmul.mubr.bf16.gmra.mxu0 %v1402
  %v1438 = vpop.f32.mrf.mxu0
  %v1439 = vadd.f32 0.0, %v1438
  %v1440 = vpop.f32.mrf.mxu0
  %v1441 = vadd.f32 0.0, %v1440
  %v1442 = vpop.f32.mrf.mxu0
  %v1443 = vpop.f32.mrf.mxu0
  %1444 = vdwg.mxu0
  %v1445 = vadd.f32 %v1441, %v1367
  %v1446 = vadd.f32 %v1445, %v252
  %v1447 = vxor.u32 %v1446, 2147483648
  %v1448 = vmul.f32 %v1447, 1.442695
  %v1449 = vpow.pop %v1448
  %v1450 = vadd.f32 %v1449, 1.0
  %v1451 = vrcp.pop %v1450
  %v1452 = vmul.f32 1.0, %v1451
  %v1453 = vtanh.pop %v1446
  %v1454 = vmul.f32 %v1452, %v1318
  %1456 = vrot.lane.b32.xlu0 %v1453, 64
  %v1457 = vpop.permute.xlu0 %1456
  %v1459 = vmul.f32 %v1452, %v1457
  %1461 = vrot.lane.b32.xlu0 %v1459, 32
  %v1462 = vpop.permute.xlu0 %1461
  %v1464 = vadd.f32 %v1454, %v1462
  %v1465 = vtanh.pop %v1464
  %1467 = vrot.lane.b32.xlu0 %v1465, 64
  %v1468 = vpop.permute.xlu0 %1467
  %v1470 = vmul.f32 %v1452, %v1468
  %1472 = vrot.lane.b32.xlu0 %v1396, 32
  %v1473 = vpop.permute.xlu0 %1472
  %1475 = vst.msk [vmem:[#allocation2] sm:$0xff] %vm169, %v1473
  %1477 = vrot.lane.b32.xlu0 %v1390, 96
  %v1478 = vpop.permute.xlu0 %1477
  %1480 = vst.msk [vmem:[#allocation3] sm:$0xff] %vm169, %v1478
  %1482 = vrot.lane.b32.xlu0 %v1470, 32
  %v1483 = vpop.permute.xlu0 %1482
  %1485 = vst.msk [vmem:[#allocation4] sm:$0xff] %vm169, %v1483
  %1487 = vrot.lane.b32.xlu0 %v1464, 96
  %v1488 = vpop.permute.xlu0 %1487
  %1490 = vst.msk [vmem:[#allocation5] sm:$0xff] %vm169, %v1488
  %1491 = vst [vmem:[#allocation6] sm:$0xff] %v1439
  // Predicated region
  $region46: #{sentiment_forward.1} parent=0 // pred_check
    %p1492 = pneg %p41
  $region47: #{sentiment_forward.1} parent=0 // pred_check_branch
    %1494 = sbr.rel (%p1492) target = $region49
  $region48: #{sentiment_forward.1} parent=0 // pred_region
    %v1495 = vld [vmem:[%s8] sm:$0x1]
    %v1497 = vlaneseq
    %v1498 = vshrl.u32 %v1497, 7
    %v1499 = vsub.s32 0, %v1498
    %v1500 = vrot.slane %v1495, %v1499
    %1501 = vrot.lane.b32.xlu0 %v1500, 96
    %v1502 = vpop.permute.xlu0 %1501
    %v1504 = vmul.f32 %v1470, %v1502
    %1506 = vrot.lane.b32.xlu0 %v1504, 32
    %v1507 = vpop.permute.xlu0 %1506
    %v1509 = vsel %vm169, %v1507, 0.0
    %1510 = vadd.xlane.f32.xlu0 %v1509
    %v1511 = vpop.xlane.xlu0 %1510
    %v1512 = vld [vmem:[#allocation7] sm:$0x1]
    %v1514 = vlaneseq
    %v1515 = vshrl.u32 %v1514, 7
    %v1516 = vsub.s32 0, %v1515
    %v1517 = vrot.slane %v1512, %v1516
    %v1519 = vadd.f32 %v1511, %v1517
    %v1520 = vxor.u32 %v1519, 2147483648
    %v1521 = vmul.f32 %v1520, 1.442695
    %v1522 = vpow.pop %v1521
    %v1523 = vadd.f32 %v1522, 1.0
    %v1524 = vrcp.pop %v1523
    %v1525 = vmul.f32 1.0, %v1524
    %vm1526 = vcmask 7168
    %1527 = vst.msk [vmem:[%s10] sm:$0xff] %vm1526, %v1525
    %1528 = vst.msk [vmem:[%s11] sm:$0xff] %vm169, %v1473
    %s1529 = scalar_lea.vmem %s11, 8
    %1530 = vst.msk [vmem:[%s1529] sm:$0xff] %vm169, %v1483
    %1531 = vst.msk [vmem:[%s12] sm:$0xff] %vm169, %v1478
    %s1532 = scalar_lea.vmem %s12, 8
    %1533 = vst.msk [vmem:[%s1532] sm:$0xff] %vm169, %v1488
  $region49: #{sentiment_forward.1} parent=0 // pred_fallthru
    _
  // Predicated region
  $region50: #{sentiment_forward.1} parent=0 // pred_check
    _
  $region51: #{sentiment_forward.1} parent=0 // pred_check_branch
    %1535 = sbr.rel (0) target = $region53
  $region52: #{sentiment_forward.1} parent=0 // pred_region
    _
  $region53: #{sentiment_forward.1} parent=0 // pred_fallthru
    _
  // Predicated region
  $region54: #{sentiment_forward.1} parent=0 // pred_check
    _
  $region55: #{sentiment_forward.1} parent=0 // pred_check_branch
    %1537 = sbr.rel (0) target = $region57
  $region56: #{sentiment_forward.1} parent=0 // pred_region
    _
  $region57: #{sentiment_forward.1} parent=0 // pred_fallthru
    _
  // Predicated region
  $region58: #{sentiment_forward.1} parent=0 // pred_check
    _
  $region59: #{sentiment_forward.1} parent=0 // pred_check_branch
    %1539 = sbr.rel (0) target = $region61
  $region60: #{sentiment_forward.1} parent=0 // pred_region
    _
  $region61: #{sentiment_forward.1} parent=0 // pred_fallthru
    _
  // Predicated region
  $region62: #{sentiment_forward.1} parent=0 // pred_check
    _
  $region63: #{sentiment_forward.1} parent=0 // pred_check_branch
    %1541 = sbr.rel (0) target = $region65
  $region64: #{sentiment_forward.1} parent=0 // pred_region
    _
  $region65: #{sentiment_forward.1} parent=0 // pred_fallthru
    _
  // Predicated region
  $region66: #{sentiment_forward.1} parent=0 // pred_check
    _
  $region67: #{sentiment_forward.1} parent=0 // pred_check_branch
    %1543 = sbr.rel (0) target = $region69
  $region68: #{sentiment_forward.1} parent=0 // pred_region
    _
  $region69: #{sentiment_forward.1} parent=0 // pred_fallthru
    _
  // Predicated region
  $region70: #{sentiment_forward.1} parent=0 // pred_check
    _
  $region71: #{sentiment_forward.1} parent=0 // pred_check_branch
    %1545 = sbr.rel (0) target = $region73
  $region72: #{sentiment_forward.1} parent=0 // pred_region
    _
  $region73: #{sentiment_forward.1} parent=0 // pred_fallthru
    _

</llo_original>
